<compile_context>
chip_gen: v7x
topology: tpu7x:2x2x1
jax: 0.10.0
libtpu: 0.0.40
codegen_flags: <defaults>
</compile_context>

<pallas_src>
import functools

import jax
import jax.numpy as jnp
from jax.experimental import pallas as pl
from jax.experimental.pallas import tpu as pltpu


def _round_up(x, m):
    return ((x + m - 1) // m) * m


def _choose_tile(n, tm_max):
    """Balanced row tiling: multiple of 8, >=2 tiles when n > 16."""
    num_tiles = max(1, pl.cdiv(n, tm_max))
    if num_tiles == 1 and n > 16:
        num_tiles = 2  # let megacore / both v7x TCs participate
    tm_eff = _round_up(pl.cdiv(n, num_tiles), 8)
    n_pad = _round_up(n, tm_eff)
    return tm_eff, n_pad


def _mlp_kernel(x_ref, w1_ref, b1_ref, w2_ref, b2_ref, o_ref):
    # x_ref : (tm, D)  bf16     w1_ref: (D, H)   bf16    b1_ref: (1, H)   f32
    # w2_ref: (H, Op)  bf16     b2_ref: (1, Op)  f32     o_ref : (tm, Op) f32
    h = jnp.dot(x_ref[...], w1_ref[...], preferred_element_type=jnp.float32)
    h = jnp.maximum(h + b1_ref[...], 0.0)                 # bias + ReLU in f32 (VPU)
    y = jnp.dot(h.astype(jnp.bfloat16), w2_ref[...],      # single bf16 cast -> MXU
                preferred_element_type=jnp.float32)
    o_ref[...] = (y + b2_ref[...]).astype(o_ref.dtype)


@functools.partial(jax.jit, static_argnames=("tm",))
def b1e_seq_pred_forward(x, w1, b1, w2, b2, *, tm=256):
    """Fused Linear -> ReLU -> Linear (y = relu(x @ w1 + b1) @ w2 + b2).

    x  : any shape that squeezes to (..., D)          (mirrors torch x.squeeze())
    w1 : (D, H), b1 : (H,)      -- stored as (in, out)
    w2 : (H, O), b2 : (O,)
    returns squeezed-leading-shape + (O,) in x's dtype.
    """
    x = jnp.squeeze(x)
    in_dtype = x.dtype
    if x.ndim == 1:               # single vector after squeeze -> torch returns 1-D
        lead_shape = ()
        x2d = x[None, :]
    else:
        lead_shape = x.shape[:-1]
        x2d = x.reshape(-1, x.shape[-1])

    N, D = x2d.shape
    H = w1.shape[1]
    O = w2.shape[1]

    tm_eff, n_pad = _choose_tile(N, tm)
    o_pad = _round_up(O, 128)     # lane-dense output stores

    # bf16 MXU operands, f32 accumulation / bias / ReLU.
    x_b = x2d.astype(jnp.bfloat16)
    if n_pad != N:
        x_b = jnp.pad(x_b, ((0, n_pad - N), (0, 0)))
    w1_b = w1.astype(jnp.bfloat16)
    w2_b = w2.astype(jnp.bfloat16)
    b2_p = b2.astype(jnp.float32)
    if o_pad != O:
        w2_b = jnp.pad(w2_b, ((0, 0), (0, o_pad - O)))
        b2_p = jnp.pad(b2_p, (0, o_pad - O))
    b1_2d = b1.astype(jnp.float32).reshape(1, H)
    b2_2d = b2_p.reshape(1, o_pad)

    grid = (n_pad // tm_eff,)
    out = pl.pallas_call(
        _mlp_kernel,
        out_shape=jax.ShapeDtypeStruct((n_pad, o_pad), jnp.float32),
        grid_spec=pltpu.PrefetchScalarGridSpec(
            num_scalar_prefetch=0,
            grid=grid,
            in_specs=[
                pl.BlockSpec((tm_eff, D), lambda i: (i, 0)),   # x row tile
                pl.BlockSpec((D, H), lambda i: (0, 0)),        # fc1 weight (resident)
                pl.BlockSpec((1, H), lambda i: (0, 0)),        # fc1 bias   (resident)
                pl.BlockSpec((H, o_pad), lambda i: (0, 0)),    # fc2 weight (resident)
                pl.BlockSpec((1, o_pad), lambda i: (0, 0)),    # fc2 bias   (resident)
            ],
            out_specs=pl.BlockSpec((tm_eff, o_pad), lambda i: (i, 0)),
        ),
        compiler_params=pltpu.CompilerParams(
            dimension_semantics=("parallel",),
            vmem_limit_bytes=48 << 20,   # safely below v7x's 64 MiB physical VMEM
        ),
    )(x_b, w1_b, b1_2d, w2_b, b2_2d)

    out = out[:N, :O].astype(in_dtype)
    return out.reshape(lead_shape + (O,)) if lead_shape != () or True else out


def init_params(key, embedding_dim, hidden_dim, output_dim):
    """nn.Linear-style U(-1/sqrt(fan_in), 1/sqrt(fan_in)) init, stored as (in, out)."""
    k1, k2, k3, k4 = jax.random.split(key, 4)
    lim1 = 1.0 / jnp.sqrt(embedding_dim)
    lim2 = 1.0 / jnp.sqrt(hidden_dim)
    w1 = jax.random.uniform(k1, (embedding_dim, hidden_dim), jnp.float32, -lim1, lim1)
    b1 = jax.random.uniform(k2, (hidden_dim,), jnp.float32, -lim1, lim1)
    w2 = jax.random.uniform(k3, (hidden_dim, output_dim), jnp.float32, -lim2, lim2)
    b2 = jax.random.uniform(k4, (output_dim,), jnp.float32, -lim2, lim2)
    return w1, b1, w2, b2


def _reference(x, w1, b1, w2, b2):
    """Pure-JAX reference matching the kernel's bf16-operand / f32-accumulate math."""
    x = jnp.squeeze(x)
    if x.ndim == 1:
        lead = ()
        x = x[None, :]
    else:
        lead = x.shape[:-1]
        x = x.reshape(-1, x.shape[-1])
    xb = x.astype(jnp.bfloat16).astype(jnp.float32)
    w1b = w1.astype(jnp.bfloat16).astype(jnp.float32)
    w2b = w2.astype(jnp.bfloat16).astype(jnp.float32)
    h = jnp.maximum(xb @ w1b + b1, 0.0)
    h = h.astype(jnp.bfloat16).astype(jnp.float32)
    y = h @ w2b + b2
    return y.reshape(lead + (y.shape[-1],))


if __name__ == "__main__":
    EMBEDDING_DIM = 256        # configurable in the module; kept small here
    HIDDEN_DIM = 2048          # hard-coded by B1ESeqPredModel.fc1
    OUTPUT_DIM = 16
    SEQ = 8                    # tokens / rows; torch input (SEQ, 1, D) -> squeeze

    key = jax.random.PRNGKey(0)
    kx, kx2, kp = jax.random.split(key, 3)
    w1, b1, w2, b2 = init_params(kp, EMBEDDING_DIM, HIDDEN_DIM, OUTPUT_DIM)

    # Case 1: tiny sequence, exercises the (SEQ, 1, D) squeeze path.
    x_raw = jax.random.normal(kx, (SEQ, 1, EMBEDDING_DIM), jnp.float32)
    out1 = jax.block_until_ready(b1e_seq_pred_forward(x_raw, w1, b1, w2, b2))
    ref1 = _reference(x_raw, w1, b1, w2, b2)
    assert out1.shape == (SEQ, OUTPUT_DIM), out1.shape
    assert jnp.allclose(out1, ref1, atol=2e-3, rtol=2e-3), "mismatch vs reference (small N)"

    # Case 2: larger, non-divisible N exercises balanced row tiling + 2-step grid.
    N2 = 300
    x2 = jax.random.normal(kx2, (N2, EMBEDDING_DIM), jnp.float32)
    out2 = jax.block_until_ready(b1e_seq_pred_forward(x2, w1, b1, w2, b2))
    ref2 = _reference(x2, w1, b1, w2, b2)
    assert out2.shape == (N2, OUTPUT_DIM), out2.shape
    assert jnp.allclose(out2, ref2, atol=2e-3, rtol=2e-3), "mismatch vs reference (tiled N)"

    print("KERNEL_OK")
</pallas_src>

<mosaic_0001>
module attributes {stable_mosaic.version = 11 : i64} {
  func.func @_mlp_kernel(%arg0: i32, %arg1: memref<8x256xbf16, #tpu.memory_space<vmem>>, %arg2: memref<256x2048xbf16, #tpu.memory_space<vmem>>, %arg3: memref<1x2048xf32, #tpu.memory_space<vmem>>, %arg4: memref<2048x128xbf16, #tpu.memory_space<vmem>>, %arg5: memref<1x128xf32, #tpu.memory_space<vmem>>, %arg6: memref<8x128xf32, #tpu.memory_space<vmem>>) attributes {dimension_semantics = [#tpu.dimension_semantics<parallel>], iteration_bounds = array<i64: 1>, scalar_prefetch = 0 : i64, scratch_operands = 0 : i64, tpu.core_type = #tpu.core_type<tc>, window_params = [{transform_indices = @transform_0, window_bounds = array<i64: 8, 256>}, {pipeline_mode = #tpu.pipeline_mode<synchronous>, transform_indices = @transform_1, window_bounds = array<i64: 256, 2048>}, {pipeline_mode = #tpu.pipeline_mode<synchronous>, transform_indices = @transform_2, window_bounds = array<i64: 1, 2048>}, {pipeline_mode = #tpu.pipeline_mode<synchronous>, transform_indices = @transform_3, window_bounds = array<i64: 2048, 128>}, {pipeline_mode = #tpu.pipeline_mode<synchronous>, transform_indices = @transform_4, window_bounds = array<i64: 1, 128>}, {transform_indices = @transform_5, window_bounds = array<i64: 8, 128>}]} {
    %c0 = arith.constant 0 : index
    %c0_0 = arith.constant 0 : index
    %0 = vector.load %arg1[%c0, %c0_0] : memref<8x256xbf16, #tpu.memory_space<vmem>>, vector<8x256xbf16>
    %c0_1 = arith.constant 0 : index
    %c0_2 = arith.constant 0 : index
    %1 = vector.load %arg2[%c0_1, %c0_2] : memref<256x2048xbf16, #tpu.memory_space<vmem>>, vector<256x2048xbf16>
    %cst = arith.constant dense<0.000000e+00> : vector<8x2048xf32>
    %2 = tpu.matmul %0, %1, %cst {dimension_numbers = #tpu.dot_dimension_numbers<[1], [0], [0], [1], [0, 0, 1, 1], [], []>} : vector<8x256xbf16>, vector<256x2048xbf16>, vector<8x2048xf32> -> vector<8x2048xf32>
    %c0_3 = arith.constant 0 : index
    %c0_4 = arith.constant 0 : index
    %3 = vector.load %arg3[%c0_3, %c0_4] : memref<1x2048xf32, #tpu.memory_space<vmem>>, vector<1x2048xf32>
    %4 = vector.broadcast %3 : vector<1x2048xf32> to vector<8x2048xf32>
    %5 = arith.addf %2, %4 : vector<8x2048xf32>
    %cst_5 = arith.constant 0.000000e+00 : f32
    %6 = vector.broadcast %cst_5 : f32 to vector<8x2048xf32>
    %7 = arith.maximumf %5, %6 : vector<8x2048xf32>
    %8 = arith.truncf %7 : vector<8x2048xf32> to vector<8x2048xbf16>
    %c0_6 = arith.constant 0 : index
    %c0_7 = arith.constant 0 : index
    %9 = vector.load %arg4[%c0_6, %c0_7] : memref<2048x128xbf16, #tpu.memory_space<vmem>>, vector<2048x128xbf16>
    %cst_8 = arith.constant dense<0.000000e+00> : vector<8x128xf32>
    %10 = tpu.matmul %8, %9, %cst_8 {dimension_numbers = #tpu.dot_dimension_numbers<[1], [0], [0], [1], [0, 0, 1, 1], [], []>} : vector<8x2048xbf16>, vector<2048x128xbf16>, vector<8x128xf32> -> vector<8x128xf32>
    %c0_9 = arith.constant 0 : index
    %c0_10 = arith.constant 0 : index
    %11 = vector.load %arg5[%c0_9, %c0_10] : memref<1x128xf32, #tpu.memory_space<vmem>>, vector<1x128xf32>
    %12 = vector.broadcast %11 : vector<1x128xf32> to vector<8x128xf32>
    %13 = arith.addf %10, %12 : vector<8x128xf32>
    %c0_11 = arith.constant 0 : index
    %c0_12 = arith.constant 0 : index
    %14 = vector.load %arg6[%c0_11, %c0_12] : memref<8x128xf32, #tpu.memory_space<vmem>>, vector<8x128xf32>
    tpu.vector_store %arg6[%c0_11, %c0_12], %13 {strides = array<i32>} : memref<8x128xf32, #tpu.memory_space<vmem>>, vector<8x128xf32>,
    return
  }
  func.func @transform_0(%arg0: i32) -> (i32, i32) {
    %c0_i32 = arith.constant 0 : i32
    %c0_i32_0 = arith.constant 0 : i32
    return %arg0, %c0_i32 : i32, i32
  }
  func.func @transform_1(%arg0: i32) -> (i32, i32) {
    %c0_i32 = arith.constant 0 : i32
    %c0_i32_0 = arith.constant 0 : i32
    %c0_i32_1 = arith.constant 0 : i32
    return %c0_i32, %c0_i32_0 : i32, i32
  }
  func.func @transform_2(%arg0: i32) -> (i32, i32) {
    %c0_i32 = arith.constant 0 : i32
    %c0_i32_0 = arith.constant 0 : i32
    %c0_i32_1 = arith.constant 0 : i32
    return %c0_i32, %c0_i32_0 : i32, i32
  }
  func.func @transform_3(%arg0: i32) -> (i32, i32) {
    %c0_i32 = arith.constant 0 : i32
    %c0_i32_0 = arith.constant 0 : i32
    %c0_i32_1 = arith.constant 0 : i32
    return %c0_i32, %c0_i32_0 : i32, i32
  }
  func.func @transform_4(%arg0: i32) -> (i32, i32) {
    %c0_i32 = arith.constant 0 : i32
    %c0_i32_0 = arith.constant 0 : i32
    %c0_i32_1 = arith.constant 0 : i32
    return %c0_i32, %c0_i32_0 : i32, i32
  }
  func.func @transform_5(%arg0: i32) -> (i32, i32) {
    %c0_i32 = arith.constant 0 : i32
    %c0_i32_0 = arith.constant 0 : i32
    return %arg0, %c0_i32 : i32, i32
  }
}

</mosaic_0001>

<llo_original>
// kernel: b1e_seq_pred_forward.1
$region0: #{b1e_seq_pred_forward.1}
  #allocation0 [shape = 'u32[]', space=smem, size = 0x4, offset = 0x4, fixed_abs, tag = 'smem constant byte address 0x4 - core index']
  #allocation1 [shape = 'u32[144,128]{1,0:T(1,128)}', space=vmem, size = 0x12000, scoped, tag = 'internal scratch']
  %s0 = inlined_call_operand.vmem [shape: bf16[8,256], index: 0, kind: input, shape index: {}]
  %s1 = inlined_call_operand.vmem [shape: bf16[256,2048], index: 1, kind: input, shape index: {}]
  %s2 = inlined_call_operand.vmem [shape: f32[1,2048], index: 2, kind: input, shape index: {}]
  %s3 = inlined_call_operand.vmem [shape: bf16[2048,128], index: 3, kind: input, shape index: {}]
  %s4 = inlined_call_operand.vmem [shape: f32[1,128], index: 4, kind: input, shape index: {}]
  %s5 = inlined_call_operand.hbm [shape: f32[8,128], index: 5, kind: output, shape index: {}]
  %s6 = sld [smem:[#allocation0]]
  $region30: #{b1e_seq_pred_forward.1} parent=0
    _
  %s8 = ssub.s32 1, %s6
  %s9 = scalar_select 0, %s8, %s6
  $region1: #{b1e_seq_pred_forward.1} parent=0
    #allocation2 [shape = 'u8[4096]{0}', space=vmem, size = 0x1000, scoped, tag = 'output window, operand 0, single buffered']
    #allocation3 [shape = 's32[1]{0}', space=sflag, size = 0x4, scoped, tag = 'scoped memory for b1e_seq_pred_forward.1']
    %10 = vsyncpa [#allocation3], 0
    // Predicated region
    $region2: #{b1e_seq_pred_forward.1} parent=1 // pred_check
      _
    $region3: #{b1e_seq_pred_forward.1} parent=1 // pred_check_branch
      %12 = sbr.rel (0) target = $region5
    $region4: #{b1e_seq_pred_forward.1} parent=1 // pred_region
      _
    $region5: #{b1e_seq_pred_forward.1} parent=1 // pred_fallthru
      _
    // Predicated region
    $region6: #{b1e_seq_pred_forward.1} parent=1 // pred_check
      _
    $region7: #{b1e_seq_pred_forward.1} parent=1 // pred_check_branch
      %14 = sbr.rel (0) target = $region9
    $region8: #{b1e_seq_pred_forward.1} parent=1 // pred_region
      _
    $region9: #{b1e_seq_pred_forward.1} parent=1 // pred_fallthru
      _
    // Predicated region
    $region10: #{b1e_seq_pred_forward.1} parent=1 // pred_check
      _
    $region11: #{b1e_seq_pred_forward.1} parent=1 // pred_check_branch
      %16 = sbr.rel (0) target = $region13
    $region12: #{b1e_seq_pred_forward.1} parent=1 // pred_region
      _
    $region13: #{b1e_seq_pred_forward.1} parent=1 // pred_fallthru
      _
    // Predicated region
    $region14: #{b1e_seq_pred_forward.1} parent=1 // pred_check
      _
    $region15: #{b1e_seq_pred_forward.1} parent=1 // pred_check_branch
      %18 = sbr.rel (0) target = $region17
    $region16: #{b1e_seq_pred_forward.1} parent=1 // pred_region
      _
    $region17: #{b1e_seq_pred_forward.1} parent=1 // pred_fallthru
      _
    // Predicated region
    $region18: #{b1e_seq_pred_forward.1} parent=1 // pred_check
      _
    $region19: #{b1e_seq_pred_forward.1} parent=1 // pred_check_branch
      %20 = sbr.rel (0) target = $region21
    $region20: #{b1e_seq_pred_forward.1} parent=1 // pred_region
      _
    $region21: #{b1e_seq_pred_forward.1} parent=1 // pred_fallthru
      _
    %v22 = vld [vmem:[%s0] sm:$0xff]
    %v23 = vld [vmem:[%s1] sm:$0xff]
    %v24 = vld [vmem:[%s1 + $0x8] sm:$0xff]
    %v25 = vld [vmem:[%s1 + $0x10] sm:$0xff]
    %v26 = vld [vmem:[%s1 + $0x18] sm:$0xff]
    %v27 = vld [vmem:[%s1 + $0x20] sm:$0xff]
    %v28 = vld [vmem:[%s1 + $0x28] sm:$0xff]
    %v29 = vld [vmem:[%s1 + $0x30] sm:$0xff]
    %v30 = vld [vmem:[%s1 + $0x38] sm:$0xff]
    %v31 = vld [vmem:[%s1 + $0x40] sm:$0xff]
    %v32 = vld [vmem:[%s1 + $0x48] sm:$0xff]
    %v33 = vld [vmem:[%s1 + $0x50] sm:$0xff]
    %v34 = vld [vmem:[%s1 + $0x58] sm:$0xff]
    %v35 = vld [vmem:[%s1 + $0x60] sm:$0xff]
    %v36 = vld [vmem:[%s1 + $0x68] sm:$0xff]
    %v37 = vld [vmem:[%s1 + $0x70] sm:$0xff]
    %v38 = vld [vmem:[%s1 + $0x78] sm:$0xff]
    %v39 = vld [vmem:[%s1 + $0x80] sm:$0xff]
    %v40 = vld [vmem:[%s1 + $0x88] sm:$0xff]
    %v41 = vld [vmem:[%s1 + $0x90] sm:$0xff]
    %v42 = vld [vmem:[%s1 + $0x98] sm:$0xff]
    %v43 = vld [vmem:[%s1 + $0xa0] sm:$0xff]
    %v44 = vld [vmem:[%s1 + $0xa8] sm:$0xff]
    %v45 = vld [vmem:[%s1 + $0xb0] sm:$0xff]
    %v46 = vld [vmem:[%s1 + $0xb8] sm:$0xff]
    %v47 = vld [vmem:[%s1 + $0xc0] sm:$0xff]
    %v48 = vld [vmem:[%s1 + $0xc8] sm:$0xff]
    %v49 = vld [vmem:[%s1 + $0xd0] sm:$0xff]
    %v50 = vld [vmem:[%s1 + $0xd8] sm:$0xff]
    %v51 = vld [vmem:[%s1 + $0xe0] sm:$0xff]
    %v52 = vld [vmem:[%s1 + $0xe8] sm:$0xff]
    %v53 = vld [vmem:[%s1 + $0xf0] sm:$0xff]
    %v54 = vld [vmem:[%s1 + $0xf8] sm:$0xff]
    %v55 = vld [vmem:[%s1 + $0x100] sm:$0xff]
    %v56 = vld [vmem:[%s1 + $0x108] sm:$0xff]
    %v57 = vld [vmem:[%s1 + $0x110] sm:$0xff]
    %v58 = vld [vmem:[%s1 + $0x118] sm:$0xff]
    %v59 = vld [vmem:[%s1 + $0x120] sm:$0xff]
    %v60 = vld [vmem:[%s1 + $0x128] sm:$0xff]
    %v61 = vld [vmem:[%s1 + $0x130] sm:$0xff]
    %v62 = vld [vmem:[%s1 + $0x138] sm:$0xff]
    %v63 = vld [vmem:[%s1 + $0x140] sm:$0xff]
    %v64 = vld [vmem:[%s1 + $0x148] sm:$0xff]
    %v65 = vld [vmem:[%s1 + $0x150] sm:$0xff]
    %v66 = vld [vmem:[%s1 + $0x158] sm:$0xff]
    %v67 = vld [vmem:[%s1 + $0x160] sm:$0xff]
    %v68 = vld [vmem:[%s1 + $0x168] sm:$0xff]
    %v69 = vld [vmem:[%s1 + $0x170] sm:$0xff]
    %v70 = vld [vmem:[%s1 + $0x178] sm:$0xff]
    %v71 = vld [vmem:[%s1 + $0x180] sm:$0xff]
    %v72 = vld [vmem:[%s1 + $0x188] sm:$0xff]
    %v73 = vld [vmem:[%s1 + $0x190] sm:$0xff]
    %v74 = vld [vmem:[%s1 + $0x198] sm:$0xff]
    %v75 = vld [vmem:[%s1 + $0x1a0] sm:$0xff]
    %v76 = vld [vmem:[%s1 + $0x1a8] sm:$0xff]
    %v77 = vld [vmem:[%s1 + $0x1b0] sm:$0xff]
    %v78 = vld [vmem:[%s1 + $0x1b8] sm:$0xff]
    %v79 = vld [vmem:[%s1 + $0x1c0] sm:$0xff]
    %v80 = vld [vmem:[%s1 + $0x1c8] sm:$0xff]
    %v81 = vld [vmem:[%s1 + $0x1d0] sm:$0xff]
    %v82 = vld [vmem:[%s1 + $0x1d8] sm:$0xff]
    %v83 = vld [vmem:[%s1 + $0x1e0] sm:$0xff]
    %v84 = vld [vmem:[%s1 + $0x1e8] sm:$0xff]
    %v85 = vld [vmem:[%s1 + $0x1f0] sm:$0xff]
    %v86 = vld [vmem:[%s1 + $0x1f8] sm:$0xff]
    %v87 = vld [vmem:[%s1 + $0x200] sm:$0xff]
    %v88 = vld [vmem:[%s1 + $0x208] sm:$0xff]
    %v89 = vld [vmem:[%s1 + $0x210] sm:$0xff]
    %v90 = vld [vmem:[%s1 + $0x218] sm:$0xff]
    %v91 = vld [vmem:[%s1 + $0x220] sm:$0xff]
    %v92 = vld [vmem:[%s1 + $0x228] sm:$0xff]
    %v93 = vld [vmem:[%s1 + $0x230] sm:$0xff]
    %v94 = vld [vmem:[%s1 + $0x238] sm:$0xff]
    %v95 = vld [vmem:[%s1 + $0x240] sm:$0xff]
    %v96 = vld [vmem:[%s1 + $0x248] sm:$0xff]
    %v97 = vld [vmem:[%s1 + $0x250] sm:$0xff]
    %v98 = vld [vmem:[%s1 + $0x258] sm:$0xff]
    %v99 = vld [vmem:[%s1 + $0x260] sm:$0xff]
    %v100 = vld [vmem:[%s1 + $0x268] sm:$0xff]
    %v101 = vld [vmem:[%s1 + $0x270] sm:$0xff]
    %v102 = vld [vmem:[%s1 + $0x278] sm:$0xff]
    %v103 = vld [vmem:[%s1 + $0x280] sm:$0xff]
    %v104 = vld [vmem:[%s1 + $0x288] sm:$0xff]
    %v105 = vld [vmem:[%s1 + $0x290] sm:$0xff]
    %v106 = vld [vmem:[%s1 + $0x298] sm:$0xff]
    %v107 = vld [vmem:[%s1 + $0x2a0] sm:$0xff]
    %v108 = vld [vmem:[%s1 + $0x2a8] sm:$0xff]
    %v109 = vld [vmem:[%s1 + $0x2b0] sm:$0xff]
    %v110 = vld [vmem:[%s1 + $0x2b8] sm:$0xff]
    %v111 = vld [vmem:[%s1 + $0x2c0] sm:$0xff]
    %v112 = vld [vmem:[%s1 + $0x2c8] sm:$0xff]
    %v113 = vld [vmem:[%s1 + $0x2d0] sm:$0xff]
    %v114 = vld [vmem:[%s1 + $0x2d8] sm:$0xff]
    %v115 = vld [vmem:[%s1 + $0x2e0] sm:$0xff]
    %v116 = vld [vmem:[%s1 + $0x2e8] sm:$0xff]
    %v117 = vld [vmem:[%s1 + $0x2f0] sm:$0xff]
    %v118 = vld [vmem:[%s1 + $0x2f8] sm:$0xff]
    %v119 = vld [vmem:[%s1 + $0x300] sm:$0xff]
    %v120 = vld [vmem:[%s1 + $0x308] sm:$0xff]
    %v121 = vld [vmem:[%s1 + $0x310] sm:$0xff]
    %v122 = vld [vmem:[%s1 + $0x318] sm:$0xff]
    %v123 = vld [vmem:[%s1 + $0x320] sm:$0xff]
    %v124 = vld [vmem:[%s1 + $0x328] sm:$0xff]
    %v125 = vld [vmem:[%s1 + $0x330] sm:$0xff]
    %v126 = vld [vmem:[%s1 + $0x338] sm:$0xff]
    %v127 = vld [vmem:[%s1 + $0x340] sm:$0xff]
    %v128 = vld [vmem:[%s1 + $0x348] sm:$0xff]
    %v129 = vld [vmem:[%s1 + $0x350] sm:$0xff]
    %v130 = vld [vmem:[%s1 + $0x358] sm:$0xff]
    %v131 = vld [vmem:[%s1 + $0x360] sm:$0xff]
    %v132 = vld [vmem:[%s1 + $0x368] sm:$0xff]
    %v133 = vld [vmem:[%s1 + $0x370] sm:$0xff]
    %v134 = vld [vmem:[%s1 + $0x378] sm:$0xff]
    %v135 = vld [vmem:[%s1 + $0x380] sm:$0xff]
    %v136 = vld [vmem:[%s1 + $0x388] sm:$0xff]
    %v137 = vld [vmem:[%s1 + $0x390] sm:$0xff]
    %v138 = vld [vmem:[%s1 + $0x398] sm:$0xff]
    %v139 = vld [vmem:[%s1 + $0x3a0] sm:$0xff]
    %v140 = vld [vmem:[%s1 + $0x3a8] sm:$0xff]
    %v141 = vld [vmem:[%s1 + $0x3b0] sm:$0xff]
    %v142 = vld [vmem:[%s1 + $0x3b8] sm:$0xff]
    %v143 = vld [vmem:[%s1 + $0x3c0] sm:$0xff]
    %v144 = vld [vmem:[%s1 + $0x3c8] sm:$0xff]
    %v145 = vld [vmem:[%s1 + $0x3d0] sm:$0xff]
    %v146 = vld [vmem:[%s1 + $0x3d8] sm:$0xff]
    %v147 = vld [vmem:[%s1 + $0x3e0] sm:$0xff]
    %v148 = vld [vmem:[%s1 + $0x3e8] sm:$0xff]
    %v149 = vld [vmem:[%s1 + $0x3f0] sm:$0xff]
    %v150 = vld [vmem:[%s1 + $0x3f8] sm:$0xff]
    %v151 = vld [vmem:[%s1 + $0x400] sm:$0xff]
    %v152 = vld [vmem:[%s1 + $0x408] sm:$0xff]
    %v153 = vld [vmem:[%s1 + $0x410] sm:$0xff]
    %v154 = vld [vmem:[%s1 + $0x418] sm:$0xff]
    %v155 = vld [vmem:[%s1 + $0x420] sm:$0xff]
    %v156 = vld [vmem:[%s1 + $0x428] sm:$0xff]
    %v157 = vld [vmem:[%s1 + $0x430] sm:$0xff]
    %v158 = vld [vmem:[%s1 + $0x438] sm:$0xff]
    %v159 = vld [vmem:[%s1 + $0x440] sm:$0xff]
    %v160 = vld [vmem:[%s1 + $0x448] sm:$0xff]
    %v161 = vld [vmem:[%s1 + $0x450] sm:$0xff]
    %v162 = vld [vmem:[%s1 + $0x458] sm:$0xff]
    %v163 = vld [vmem:[%s1 + $0x460] sm:$0xff]
    %v164 = vld [vmem:[%s1 + $0x468] sm:$0xff]
    %v165 = vld [vmem:[%s1 + $0x470] sm:$0xff]
    %v166 = vld [vmem:[%s1 + $0x478] sm:$0xff]
    %v167 = vld [vmem:[%s1 + $0x480] sm:$0xff]
    %v168 = vld [vmem:[%s1 + $0x488] sm:$0xff]
    %v169 = vld [vmem:[%s1 + $0x490] sm:$0xff]
    %v170 = vld [vmem:[%s1 + $0x498] sm:$0xff]
    %v171 = vld [vmem:[%s1 + $0x4a0] sm:$0xff]
    %v172 = vld [vmem:[%s1 + $0x4a8] sm:$0xff]
    %v173 = vld [vmem:[%s1 + $0x4b0] sm:$0xff]
    %v174 = vld [vmem:[%s1 + $0x4b8] sm:$0xff]
    %v175 = vld [vmem:[%s1 + $0x4c0] sm:$0xff]
    %v176 = vld [vmem:[%s1 + $0x4c8] sm:$0xff]
    %v177 = vld [vmem:[%s1 + $0x4d0] sm:$0xff]
    %v178 = vld [vmem:[%s1 + $0x4d8] sm:$0xff]
    %v179 = vld [vmem:[%s1 + $0x4e0] sm:$0xff]
    %v180 = vld [vmem:[%s1 + $0x4e8] sm:$0xff]
    %v181 = vld [vmem:[%s1 + $0x4f0] sm:$0xff]
    %v182 = vld [vmem:[%s1 + $0x4f8] sm:$0xff]
    %v183 = vld [vmem:[%s1 + $0x500] sm:$0xff]
    %v184 = vld [vmem:[%s1 + $0x508] sm:$0xff]
    %v185 = vld [vmem:[%s1 + $0x510] sm:$0xff]
    %v186 = vld [vmem:[%s1 + $0x518] sm:$0xff]
    %v187 = vld [vmem:[%s1 + $0x520] sm:$0xff]
    %v188 = vld [vmem:[%s1 + $0x528] sm:$0xff]
    %v189 = vld [vmem:[%s1 + $0x530] sm:$0xff]
    %v190 = vld [vmem:[%s1 + $0x538] sm:$0xff]
    %v191 = vld [vmem:[%s1 + $0x540] sm:$0xff]
    %v192 = vld [vmem:[%s1 + $0x548] sm:$0xff]
    %v193 = vld [vmem:[%s1 + $0x550] sm:$0xff]
    %v194 = vld [vmem:[%s1 + $0x558] sm:$0xff]
    %v195 = vld [vmem:[%s1 + $0x560] sm:$0xff]
    %v196 = vld [vmem:[%s1 + $0x568] sm:$0xff]
    %v197 = vld [vmem:[%s1 + $0x570] sm:$0xff]
    %v198 = vld [vmem:[%s1 + $0x578] sm:$0xff]
    %v199 = vld [vmem:[%s1 + $0x580] sm:$0xff]
    %v200 = vld [vmem:[%s1 + $0x588] sm:$0xff]
    %v201 = vld [vmem:[%s1 + $0x590] sm:$0xff]
    %v202 = vld [vmem:[%s1 + $0x598] sm:$0xff]
    %v203 = vld [vmem:[%s1 + $0x5a0] sm:$0xff]
    %v204 = vld [vmem:[%s1 + $0x5a8] sm:$0xff]
    %v205 = vld [vmem:[%s1 + $0x5b0] sm:$0xff]
    %v206 = vld [vmem:[%s1 + $0x5b8] sm:$0xff]
    %v207 = vld [vmem:[%s1 + $0x5c0] sm:$0xff]
    %v208 = vld [vmem:[%s1 + $0x5c8] sm:$0xff]
    %v209 = vld [vmem:[%s1 + $0x5d0] sm:$0xff]
    %v210 = vld [vmem:[%s1 + $0x5d8] sm:$0xff]
    %v211 = vld [vmem:[%s1 + $0x5e0] sm:$0xff]
    %v212 = vld [vmem:[%s1 + $0x5e8] sm:$0xff]
    %v213 = vld [vmem:[%s1 + $0x5f0] sm:$0xff]
    %v214 = vld [vmem:[%s1 + $0x5f8] sm:$0xff]
    %v215 = vld [vmem:[%s1 + $0x600] sm:$0xff]
    %v216 = vld [vmem:[%s1 + $0x608] sm:$0xff]
    %v217 = vld [vmem:[%s1 + $0x610] sm:$0xff]
    %v218 = vld [vmem:[%s1 + $0x618] sm:$0xff]
    %v219 = vld [vmem:[%s1 + $0x620] sm:$0xff]
    %v220 = vld [vmem:[%s1 + $0x628] sm:$0xff]
    %v221 = vld [vmem:[%s1 + $0x630] sm:$0xff]
    %v222 = vld [vmem:[%s1 + $0x638] sm:$0xff]
    %v223 = vld [vmem:[%s1 + $0x640] sm:$0xff]
    %v224 = vld [vmem:[%s1 + $0x648] sm:$0xff]
    %v225 = vld [vmem:[%s1 + $0x650] sm:$0xff]
    %v226 = vld [vmem:[%s1 + $0x658] sm:$0xff]
    %v227 = vld [vmem:[%s1 + $0x660] sm:$0xff]
    %v228 = vld [vmem:[%s1 + $0x668] sm:$0xff]
    %v229 = vld [vmem:[%s1 + $0x670] sm:$0xff]
    %v230 = vld [vmem:[%s1 + $0x678] sm:$0xff]
    %v231 = vld [vmem:[%s1 + $0x680] sm:$0xff]
    %v232 = vld [vmem:[%s1 + $0x688] sm:$0xff]
    %v233 = vld [vmem:[%s1 + $0x690] sm:$0xff]
    %v234 = vld [vmem:[%s1 + $0x698] sm:$0xff]
    %v235 = vld [vmem:[%s1 + $0x6a0] sm:$0xff]
    %v236 = vld [vmem:[%s1 + $0x6a8] sm:$0xff]
    %v237 = vld [vmem:[%s1 + $0x6b0] sm:$0xff]
    %v238 = vld [vmem:[%s1 + $0x6b8] sm:$0xff]
    %v239 = vld [vmem:[%s1 + $0x6c0] sm:$0xff]
    %v240 = vld [vmem:[%s1 + $0x6c8] sm:$0xff]
    %v241 = vld [vmem:[%s1 + $0x6d0] sm:$0xff]
    %v242 = vld [vmem:[%s1 + $0x6d8] sm:$0xff]
    %v243 = vld [vmem:[%s1 + $0x6e0] sm:$0xff]
    %v244 = vld [vmem:[%s1 + $0x6e8] sm:$0xff]
    %v245 = vld [vmem:[%s1 + $0x6f0] sm:$0xff]
    %v246 = vld [vmem:[%s1 + $0x6f8] sm:$0xff]
    %v247 = vld [vmem:[%s1 + $0x700] sm:$0xff]
    %v248 = vld [vmem:[%s1 + $0x708] sm:$0xff]
    %v249 = vld [vmem:[%s1 + $0x710] sm:$0xff]
    %v250 = vld [vmem:[%s1 + $0x718] sm:$0xff]
    %v251 = vld [vmem:[%s1 + $0x720] sm:$0xff]
    %v252 = vld [vmem:[%s1 + $0x728] sm:$0xff]
    %v253 = vld [vmem:[%s1 + $0x730] sm:$0xff]
    %v254 = vld [vmem:[%s1 + $0x738] sm:$0xff]
    %v255 = vld [vmem:[%s1 + $0x740] sm:$0xff]
    %v256 = vld [vmem:[%s1 + $0x748] sm:$0xff]
    %v257 = vld [vmem:[%s1 + $0x750] sm:$0xff]
    %v258 = vld [vmem:[%s1 + $0x758] sm:$0xff]
    %v259 = vld [vmem:[%s1 + $0x760] sm:$0xff]
    %v260 = vld [vmem:[%s1 + $0x768] sm:$0xff]
    %v261 = vld [vmem:[%s1 + $0x770] sm:$0xff]
    %v262 = vld [vmem:[%s1 + $0x778] sm:$0xff]
    %v263 = vld [vmem:[%s1 + $0x780] sm:$0xff]
    %v264 = vld [vmem:[%s1 + $0x788] sm:$0xff]
    %v265 = vld [vmem:[%s1 + $0x790] sm:$0xff]
    %v266 = vld [vmem:[%s1 + $0x798] sm:$0xff]
    %v267 = vld [vmem:[%s1 + $0x7a0] sm:$0xff]
    %v268 = vld [vmem:[%s1 + $0x7a8] sm:$0xff]
    %v269 = vld [vmem:[%s1 + $0x7b0] sm:$0xff]
    %v270 = vld [vmem:[%s1 + $0x7b8] sm:$0xff]
    %v271 = vld [vmem:[%s1 + $0x7c0] sm:$0xff]
    %v272 = vld [vmem:[%s1 + $0x7c8] sm:$0xff]
    %v273 = vld [vmem:[%s1 + $0x7d0] sm:$0xff]
    %v274 = vld [vmem:[%s1 + $0x7d8] sm:$0xff]
    %v275 = vld [vmem:[%s1 + $0x7e0] sm:$0xff]
    %v276 = vld [vmem:[%s1 + $0x7e8] sm:$0xff]
    %v277 = vld [vmem:[%s1 + $0x7f0] sm:$0xff]
    %v278 = vld [vmem:[%s1 + $0x7f8] sm:$0xff]
    %v279 = vld [vmem:[%s2] sm:$0xff]
    %v280 = vld [vmem:[%s2 + $0x8] sm:$0xff]
    %v283 = vlaneseq
    %v284 = vshrl.u32 %v283, 7
    %v285 = vsub.s32 0, %v284
    %v286 = vrot.slane %v279, %v285
    %v287 = vlaneseq
    %v288 = vshrl.u32 %v287, 7
    %v289 = vsub.s32 1, %v288
    %v290 = vrot.slane %v279, %v289
    %v291 = vlaneseq
    %v292 = vshrl.u32 %v291, 7
    %v293 = vsub.s32 2, %v292
    %v294 = vrot.slane %v279, %v293
    %v295 = vlaneseq
    %v296 = vshrl.u32 %v295, 7
    %v297 = vsub.s32 3, %v296
    %v298 = vrot.slane %v279, %v297
    %v299 = vlaneseq
    %v300 = vshrl.u32 %v299, 7
    %v301 = vsub.s32 4, %v300
    %v302 = vrot.slane %v279, %v301
    %v303 = vlaneseq
    %v304 = vshrl.u32 %v303, 7
    %v305 = vsub.s32 5, %v304
    %v306 = vrot.slane %v279, %v305
    %v307 = vlaneseq
    %v308 = vshrl.u32 %v307, 7
    %v309 = vsub.s32 6, %v308
    %v310 = vrot.slane %v279, %v309
    %v311 = vlaneseq
    %v312 = vshrl.u32 %v311, 7
    %v313 = vsub.s32 7, %v312
    %v314 = vrot.slane %v279, %v313
    %v315 = vlaneseq
    %v316 = vshrl.u32 %v315, 7
    %v317 = vsub.s32 0, %v316
    %v318 = vrot.slane %v280, %v317
    %v319 = vlaneseq
    %v320 = vshrl.u32 %v319, 7
    %v321 = vsub.s32 1, %v320
    %v322 = vrot.slane %v280, %v321
    %v323 = vlaneseq
    %v324 = vshrl.u32 %v323, 7
    %v325 = vsub.s32 2, %v324
    %v326 = vrot.slane %v280, %v325
    %v327 = vlaneseq
    %v328 = vshrl.u32 %v327, 7
    %v329 = vsub.s32 3, %v328
    %v330 = vrot.slane %v280, %v329
    %v331 = vlaneseq
    %v332 = vshrl.u32 %v331, 7
    %v333 = vsub.s32 4, %v332
    %v334 = vrot.slane %v280, %v333
    %v335 = vlaneseq
    %v336 = vshrl.u32 %v335, 7
    %v337 = vsub.s32 5, %v336
    %v338 = vrot.slane %v280, %v337
    %v339 = vlaneseq
    %v340 = vshrl.u32 %v339, 7
    %v341 = vsub.s32 6, %v340
    %v342 = vrot.slane %v280, %v341
    %v343 = vlaneseq
    %v344 = vshrl.u32 %v343, 7
    %v345 = vsub.s32 7, %v344
    %v346 = vrot.slane %v280, %v345
    %v364 = vunpack.c.l.b16 %v22
    %v365 = vunpack.c.h.b16 %v22
    %v366 = vpack.c.b16 %v364, %v364
    %v367 = vpack.c.b16 %v365, %v365
    %v626 = vunpack.c.l.b16 %v23
    %v627 = vunpack.c.h.b16 %v23
    %v628 = vunpack.c.l.b16 %v24
    %v629 = vunpack.c.h.b16 %v24
    %v630 = vunpack.c.l.b16 %v25
    %v631 = vunpack.c.h.b16 %v25
    %v632 = vunpack.c.l.b16 %v26
    %v633 = vunpack.c.h.b16 %v26
    %v634 = vunpack.c.l.b16 %v27
    %v635 = vunpack.c.h.b16 %v27
    %v636 = vunpack.c.l.b16 %v28
    %v637 = vunpack.c.h.b16 %v28
    %v638 = vunpack.c.l.b16 %v29
    %v639 = vunpack.c.h.b16 %v29
    %v640 = vunpack.c.l.b16 %v30
    %v641 = vunpack.c.h.b16 %v30
    %v642 = vunpack.c.l.b16 %v31
    %v643 = vunpack.c.h.b16 %v31
    %v644 = vunpack.c.l.b16 %v32
    %v645 = vunpack.c.h.b16 %v32
    %v646 = vunpack.c.l.b16 %v33
    %v647 = vunpack.c.h.b16 %v33
    %v648 = vunpack.c.l.b16 %v34
    %v649 = vunpack.c.h.b16 %v34
    %v650 = vunpack.c.l.b16 %v35
    %v651 = vunpack.c.h.b16 %v35
    %v652 = vunpack.c.l.b16 %v36
    %v653 = vunpack.c.h.b16 %v36
    %v654 = vunpack.c.l.b16 %v37
    %v655 = vunpack.c.h.b16 %v37
    %v656 = vunpack.c.l.b16 %v38
    %v657 = vunpack.c.h.b16 %v38
    %v658 = vunpack.c.l.b16 %v39
    %v659 = vunpack.c.h.b16 %v39
    %v660 = vunpack.c.l.b16 %v40
    %v661 = vunpack.c.h.b16 %v40
    %v662 = vunpack.c.l.b16 %v41
    %v663 = vunpack.c.h.b16 %v41
    %v664 = vunpack.c.l.b16 %v42
    %v665 = vunpack.c.h.b16 %v42
    %v666 = vunpack.c.l.b16 %v43
    %v667 = vunpack.c.h.b16 %v43
    %v668 = vunpack.c.l.b16 %v44
    %v669 = vunpack.c.h.b16 %v44
    %v670 = vunpack.c.l.b16 %v45
    %v671 = vunpack.c.h.b16 %v45
    %v672 = vunpack.c.l.b16 %v46
    %v673 = vunpack.c.h.b16 %v46
    %v674 = vunpack.c.l.b16 %v47
    %v675 = vunpack.c.h.b16 %v47
    %v676 = vunpack.c.l.b16 %v48
    %v677 = vunpack.c.h.b16 %v48
    %v678 = vunpack.c.l.b16 %v49
    %v679 = vunpack.c.h.b16 %v49
    %v680 = vunpack.c.l.b16 %v50
    %v681 = vunpack.c.h.b16 %v50
    %v682 = vunpack.c.l.b16 %v51
    %v683 = vunpack.c.h.b16 %v51
    %v684 = vunpack.c.l.b16 %v52
    %v685 = vunpack.c.h.b16 %v52
    %v686 = vunpack.c.l.b16 %v53
    %v687 = vunpack.c.h.b16 %v53
    %v688 = vunpack.c.l.b16 %v54
    %v689 = vunpack.c.h.b16 %v54
    %v690 = vunpack.c.l.b16 %v55
    %v691 = vunpack.c.h.b16 %v55
    %v692 = vunpack.c.l.b16 %v56
    %v693 = vunpack.c.h.b16 %v56
    %v694 = vunpack.c.l.b16 %v57
    %v695 = vunpack.c.h.b16 %v57
    %v696 = vunpack.c.l.b16 %v58
    %v697 = vunpack.c.h.b16 %v58
    %v698 = vunpack.c.l.b16 %v59
    %v699 = vunpack.c.h.b16 %v59
    %v700 = vunpack.c.l.b16 %v60
    %v701 = vunpack.c.h.b16 %v60
    %v702 = vunpack.c.l.b16 %v61
    %v703 = vunpack.c.h.b16 %v61
    %v704 = vunpack.c.l.b16 %v62
    %v705 = vunpack.c.h.b16 %v62
    %v706 = vunpack.c.l.b16 %v63
    %v707 = vunpack.c.h.b16 %v63
    %v708 = vunpack.c.l.b16 %v64
    %v709 = vunpack.c.h.b16 %v64
    %v710 = vunpack.c.l.b16 %v65
    %v711 = vunpack.c.h.b16 %v65
    %v712 = vunpack.c.l.b16 %v66
    %v713 = vunpack.c.h.b16 %v66
    %v714 = vunpack.c.l.b16 %v67
    %v715 = vunpack.c.h.b16 %v67
    %v716 = vunpack.c.l.b16 %v68
    %v717 = vunpack.c.h.b16 %v68
    %v718 = vunpack.c.l.b16 %v69
    %v719 = vunpack.c.h.b16 %v69
    %v720 = vunpack.c.l.b16 %v70
    %v721 = vunpack.c.h.b16 %v70
    %v722 = vunpack.c.l.b16 %v71
    %v723 = vunpack.c.h.b16 %v71
    %v724 = vunpack.c.l.b16 %v72
    %v725 = vunpack.c.h.b16 %v72
    %v726 = vunpack.c.l.b16 %v73
    %v727 = vunpack.c.h.b16 %v73
    %v728 = vunpack.c.l.b16 %v74
    %v729 = vunpack.c.h.b16 %v74
    %v730 = vunpack.c.l.b16 %v75
    %v731 = vunpack.c.h.b16 %v75
    %v732 = vunpack.c.l.b16 %v76
    %v733 = vunpack.c.h.b16 %v76
    %v734 = vunpack.c.l.b16 %v77
    %v735 = vunpack.c.h.b16 %v77
    %v736 = vunpack.c.l.b16 %v78
    %v737 = vunpack.c.h.b16 %v78
    %v738 = vunpack.c.l.b16 %v79
    %v739 = vunpack.c.h.b16 %v79
    %v740 = vunpack.c.l.b16 %v80
    %v741 = vunpack.c.h.b16 %v80
    %v742 = vunpack.c.l.b16 %v81
    %v743 = vunpack.c.h.b16 %v81
    %v744 = vunpack.c.l.b16 %v82
    %v745 = vunpack.c.h.b16 %v82
    %v746 = vunpack.c.l.b16 %v83
    %v747 = vunpack.c.h.b16 %v83
    %v748 = vunpack.c.l.b16 %v84
    %v749 = vunpack.c.h.b16 %v84
    %v750 = vunpack.c.l.b16 %v85
    %v751 = vunpack.c.h.b16 %v85
    %v752 = vunpack.c.l.b16 %v86
    %v753 = vunpack.c.h.b16 %v86
    %v754 = vunpack.c.l.b16 %v87
    %v755 = vunpack.c.h.b16 %v87
    %v756 = vunpack.c.l.b16 %v88
    %v757 = vunpack.c.h.b16 %v88
    %v758 = vunpack.c.l.b16 %v89
    %v759 = vunpack.c.h.b16 %v89
    %v760 = vunpack.c.l.b16 %v90
    %v761 = vunpack.c.h.b16 %v90
    %v762 = vunpack.c.l.b16 %v91
    %v763 = vunpack.c.h.b16 %v91
    %v764 = vunpack.c.l.b16 %v92
    %v765 = vunpack.c.h.b16 %v92
    %v766 = vunpack.c.l.b16 %v93
    %v767 = vunpack.c.h.b16 %v93
    %v768 = vunpack.c.l.b16 %v94
    %v769 = vunpack.c.h.b16 %v94
    %v770 = vunpack.c.l.b16 %v95
    %v771 = vunpack.c.h.b16 %v95
    %v772 = vunpack.c.l.b16 %v96
    %v773 = vunpack.c.h.b16 %v96
    %v774 = vunpack.c.l.b16 %v97
    %v775 = vunpack.c.h.b16 %v97
    %v776 = vunpack.c.l.b16 %v98
    %v777 = vunpack.c.h.b16 %v98
    %v778 = vunpack.c.l.b16 %v99
    %v779 = vunpack.c.h.b16 %v99
    %v780 = vunpack.c.l.b16 %v100
    %v781 = vunpack.c.h.b16 %v100
    %v782 = vunpack.c.l.b16 %v101
    %v783 = vunpack.c.h.b16 %v101
    %v784 = vunpack.c.l.b16 %v102
    %v785 = vunpack.c.h.b16 %v102
    %v786 = vunpack.c.l.b16 %v103
    %v787 = vunpack.c.h.b16 %v103
    %v788 = vunpack.c.l.b16 %v104
    %v789 = vunpack.c.h.b16 %v104
    %v790 = vunpack.c.l.b16 %v105
    %v791 = vunpack.c.h.b16 %v105
    %v792 = vunpack.c.l.b16 %v106
    %v793 = vunpack.c.h.b16 %v106
    %v794 = vunpack.c.l.b16 %v107
    %v795 = vunpack.c.h.b16 %v107
    %v796 = vunpack.c.l.b16 %v108
    %v797 = vunpack.c.h.b16 %v108
    %v798 = vunpack.c.l.b16 %v109
    %v799 = vunpack.c.h.b16 %v109
    %v800 = vunpack.c.l.b16 %v110
    %v801 = vunpack.c.h.b16 %v110
    %v802 = vunpack.c.l.b16 %v111
    %v803 = vunpack.c.h.b16 %v111
    %v804 = vunpack.c.l.b16 %v112
    %v805 = vunpack.c.h.b16 %v112
    %v806 = vunpack.c.l.b16 %v113
    %v807 = vunpack.c.h.b16 %v113
    %v808 = vunpack.c.l.b16 %v114
    %v809 = vunpack.c.h.b16 %v114
    %v810 = vunpack.c.l.b16 %v115
    %v811 = vunpack.c.h.b16 %v115
    %v812 = vunpack.c.l.b16 %v116
    %v813 = vunpack.c.h.b16 %v116
    %v814 = vunpack.c.l.b16 %v117
    %v815 = vunpack.c.h.b16 %v117
    %v816 = vunpack.c.l.b16 %v118
    %v817 = vunpack.c.h.b16 %v118
    %v818 = vunpack.c.l.b16 %v119
    %v819 = vunpack.c.h.b16 %v119
    %v820 = vunpack.c.l.b16 %v120
    %v821 = vunpack.c.h.b16 %v120
    %v822 = vunpack.c.l.b16 %v121
    %v823 = vunpack.c.h.b16 %v121
    %v824 = vunpack.c.l.b16 %v122
    %v825 = vunpack.c.h.b16 %v122
    %v826 = vunpack.c.l.b16 %v123
    %v827 = vunpack.c.h.b16 %v123
    %v828 = vunpack.c.l.b16 %v124
    %v829 = vunpack.c.h.b16 %v124
    %v830 = vunpack.c.l.b16 %v125
    %v831 = vunpack.c.h.b16 %v125
    %v832 = vunpack.c.l.b16 %v126
    %v833 = vunpack.c.h.b16 %v126
    %v834 = vunpack.c.l.b16 %v127
    %v835 = vunpack.c.h.b16 %v127
    %v836 = vunpack.c.l.b16 %v128
    %v837 = vunpack.c.h.b16 %v128
    %v838 = vunpack.c.l.b16 %v129
    %v839 = vunpack.c.h.b16 %v129
    %v840 = vunpack.c.l.b16 %v130
    %v841 = vunpack.c.h.b16 %v130
    %v842 = vunpack.c.l.b16 %v131
    %v843 = vunpack.c.h.b16 %v131
    %v844 = vunpack.c.l.b16 %v132
    %v845 = vunpack.c.h.b16 %v132
    %v846 = vunpack.c.l.b16 %v133
    %v847 = vunpack.c.h.b16 %v133
    %v848 = vunpack.c.l.b16 %v134
    %v849 = vunpack.c.h.b16 %v134
    %v850 = vunpack.c.l.b16 %v135
    %v851 = vunpack.c.h.b16 %v135
    %v852 = vunpack.c.l.b16 %v136
    %v853 = vunpack.c.h.b16 %v136
    %v854 = vunpack.c.l.b16 %v137
    %v855 = vunpack.c.h.b16 %v137
    %v856 = vunpack.c.l.b16 %v138
    %v857 = vunpack.c.h.b16 %v138
    %v858 = vunpack.c.l.b16 %v139
    %v859 = vunpack.c.h.b16 %v139
    %v860 = vunpack.c.l.b16 %v140
    %v861 = vunpack.c.h.b16 %v140
    %v862 = vunpack.c.l.b16 %v141
    %v863 = vunpack.c.h.b16 %v141
    %v864 = vunpack.c.l.b16 %v142
    %v865 = vunpack.c.h.b16 %v142
    %v866 = vunpack.c.l.b16 %v143
    %v867 = vunpack.c.h.b16 %v143
    %v868 = vunpack.c.l.b16 %v144
    %v869 = vunpack.c.h.b16 %v144
    %v870 = vunpack.c.l.b16 %v145
    %v871 = vunpack.c.h.b16 %v145
    %v872 = vunpack.c.l.b16 %v146
    %v873 = vunpack.c.h.b16 %v146
    %v874 = vunpack.c.l.b16 %v147
    %v875 = vunpack.c.h.b16 %v147
    %v876 = vunpack.c.l.b16 %v148
    %v877 = vunpack.c.h.b16 %v148
    %v878 = vunpack.c.l.b16 %v149
    %v879 = vunpack.c.h.b16 %v149
    %v880 = vunpack.c.l.b16 %v150
    %v881 = vunpack.c.h.b16 %v150
    %v882 = vunpack.c.l.b16 %v151
    %v883 = vunpack.c.h.b16 %v151
    %v884 = vunpack.c.l.b16 %v152
    %v885 = vunpack.c.h.b16 %v152
    %v886 = vunpack.c.l.b16 %v153
    %v887 = vunpack.c.h.b16 %v153
    %v888 = vunpack.c.l.b16 %v154
    %v889 = vunpack.c.h.b16 %v154
    %v890 = vunpack.c.l.b16 %v155
    %v891 = vunpack.c.h.b16 %v155
    %v892 = vunpack.c.l.b16 %v156
    %v893 = vunpack.c.h.b16 %v156
    %v894 = vunpack.c.l.b16 %v157
    %v895 = vunpack.c.h.b16 %v157
    %v896 = vunpack.c.l.b16 %v158
    %v897 = vunpack.c.h.b16 %v158
    %v898 = vunpack.c.l.b16 %v159
    %v899 = vunpack.c.h.b16 %v159
    %v900 = vunpack.c.l.b16 %v160
    %v901 = vunpack.c.h.b16 %v160
    %v902 = vunpack.c.l.b16 %v161
    %v903 = vunpack.c.h.b16 %v161
    %v904 = vunpack.c.l.b16 %v162
    %v905 = vunpack.c.h.b16 %v162
    %v906 = vunpack.c.l.b16 %v163
    %v907 = vunpack.c.h.b16 %v163
    %v908 = vunpack.c.l.b16 %v164
    %v909 = vunpack.c.h.b16 %v164
    %v910 = vunpack.c.l.b16 %v165
    %v911 = vunpack.c.h.b16 %v165
    %v912 = vunpack.c.l.b16 %v166
    %v913 = vunpack.c.h.b16 %v166
    %v914 = vunpack.c.l.b16 %v167
    %v915 = vunpack.c.h.b16 %v167
    %v916 = vunpack.c.l.b16 %v168
    %v917 = vunpack.c.h.b16 %v168
    %v918 = vunpack.c.l.b16 %v169
    %v919 = vunpack.c.h.b16 %v169
    %v920 = vunpack.c.l.b16 %v170
    %v921 = vunpack.c.h.b16 %v170
    %v922 = vunpack.c.l.b16 %v171
    %v923 = vunpack.c.h.b16 %v171
    %v924 = vunpack.c.l.b16 %v172
    %v925 = vunpack.c.h.b16 %v172
    %v926 = vunpack.c.l.b16 %v173
    %v927 = vunpack.c.h.b16 %v173
    %v928 = vunpack.c.l.b16 %v174
    %v929 = vunpack.c.h.b16 %v174
    %v930 = vunpack.c.l.b16 %v175
    %v931 = vunpack.c.h.b16 %v175
    %v932 = vunpack.c.l.b16 %v176
    %v933 = vunpack.c.h.b16 %v176
    %v934 = vunpack.c.l.b16 %v177
    %v935 = vunpack.c.h.b16 %v177
    %v936 = vunpack.c.l.b16 %v178
    %v937 = vunpack.c.h.b16 %v178
    %v938 = vunpack.c.l.b16 %v179
    %v939 = vunpack.c.h.b16 %v179
    %v940 = vunpack.c.l.b16 %v180
    %v941 = vunpack.c.h.b16 %v180
    %v942 = vunpack.c.l.b16 %v181
    %v943 = vunpack.c.h.b16 %v181
    %v944 = vunpack.c.l.b16 %v182
    %v945 = vunpack.c.h.b16 %v182
    %v946 = vunpack.c.l.b16 %v183
    %v947 = vunpack.c.h.b16 %v183
    %v948 = vunpack.c.l.b16 %v184
    %v949 = vunpack.c.h.b16 %v184
    %v950 = vunpack.c.l.b16 %v185
    %v951 = vunpack.c.h.b16 %v185
    %v952 = vunpack.c.l.b16 %v186
    %v953 = vunpack.c.h.b16 %v186
    %v954 = vunpack.c.l.b16 %v187
    %v955 = vunpack.c.h.b16 %v187
    %v956 = vunpack.c.l.b16 %v188
    %v957 = vunpack.c.h.b16 %v188
    %v958 = vunpack.c.l.b16 %v189
    %v959 = vunpack.c.h.b16 %v189
    %v960 = vunpack.c.l.b16 %v190
    %v961 = vunpack.c.h.b16 %v190
    %v962 = vunpack.c.l.b16 %v191
    %v963 = vunpack.c.h.b16 %v191
    %v964 = vunpack.c.l.b16 %v192
    %v965 = vunpack.c.h.b16 %v192
    %v966 = vunpack.c.l.b16 %v193
    %v967 = vunpack.c.h.b16 %v193
    %v968 = vunpack.c.l.b16 %v194
    %v969 = vunpack.c.h.b16 %v194
    %v970 = vunpack.c.l.b16 %v195
    %v971 = vunpack.c.h.b16 %v195
    %v972 = vunpack.c.l.b16 %v196
    %v973 = vunpack.c.h.b16 %v196
    %v974 = vunpack.c.l.b16 %v197
    %v975 = vunpack.c.h.b16 %v197
    %v976 = vunpack.c.l.b16 %v198
    %v977 = vunpack.c.h.b16 %v198
    %v978 = vunpack.c.l.b16 %v199
    %v979 = vunpack.c.h.b16 %v199
    %v980 = vunpack.c.l.b16 %v200
    %v981 = vunpack.c.h.b16 %v200
    %v982 = vunpack.c.l.b16 %v201
    %v983 = vunpack.c.h.b16 %v201
    %v984 = vunpack.c.l.b16 %v202
    %v985 = vunpack.c.h.b16 %v202
    %v986 = vunpack.c.l.b16 %v203
    %v987 = vunpack.c.h.b16 %v203
    %v988 = vunpack.c.l.b16 %v204
    %v989 = vunpack.c.h.b16 %v204
    %v990 = vunpack.c.l.b16 %v205
    %v991 = vunpack.c.h.b16 %v205
    %v992 = vunpack.c.l.b16 %v206
    %v993 = vunpack.c.h.b16 %v206
    %v994 = vunpack.c.l.b16 %v207
    %v995 = vunpack.c.h.b16 %v207
    %v996 = vunpack.c.l.b16 %v208
    %v997 = vunpack.c.h.b16 %v208
    %v998 = vunpack.c.l.b16 %v209
    %v999 = vunpack.c.h.b16 %v209
    %v1000 = vunpack.c.l.b16 %v210
    %v1001 = vunpack.c.h.b16 %v210
    %v1002 = vunpack.c.l.b16 %v211
    %v1003 = vunpack.c.h.b16 %v211
    %v1004 = vunpack.c.l.b16 %v212
    %v1005 = vunpack.c.h.b16 %v212
    %v1006 = vunpack.c.l.b16 %v213
    %v1007 = vunpack.c.h.b16 %v213
    %v1008 = vunpack.c.l.b16 %v214
    %v1009 = vunpack.c.h.b16 %v214
    %v1010 = vunpack.c.l.b16 %v215
    %v1011 = vunpack.c.h.b16 %v215
    %v1012 = vunpack.c.l.b16 %v216
    %v1013 = vunpack.c.h.b16 %v216
    %v1014 = vunpack.c.l.b16 %v217
    %v1015 = vunpack.c.h.b16 %v217
    %v1016 = vunpack.c.l.b16 %v218
    %v1017 = vunpack.c.h.b16 %v218
    %v1018 = vunpack.c.l.b16 %v219
    %v1019 = vunpack.c.h.b16 %v219
    %v1020 = vunpack.c.l.b16 %v220
    %v1021 = vunpack.c.h.b16 %v220
    %v1022 = vunpack.c.l.b16 %v221
    %v1023 = vunpack.c.h.b16 %v221
    %v1024 = vunpack.c.l.b16 %v222
    %v1025 = vunpack.c.h.b16 %v222
    %v1026 = vunpack.c.l.b16 %v223
    %v1027 = vunpack.c.h.b16 %v223
    %v1028 = vunpack.c.l.b16 %v224
    %v1029 = vunpack.c.h.b16 %v224
    %v1030 = vunpack.c.l.b16 %v225
    %v1031 = vunpack.c.h.b16 %v225
    %v1032 = vunpack.c.l.b16 %v226
    %v1033 = vunpack.c.h.b16 %v226
    %v1034 = vunpack.c.l.b16 %v227
    %v1035 = vunpack.c.h.b16 %v227
    %v1036 = vunpack.c.l.b16 %v228
    %v1037 = vunpack.c.h.b16 %v228
    %v1038 = vunpack.c.l.b16 %v229
    %v1039 = vunpack.c.h.b16 %v229
    %v1040 = vunpack.c.l.b16 %v230
    %v1041 = vunpack.c.h.b16 %v230
    %v1042 = vunpack.c.l.b16 %v231
    %v1043 = vunpack.c.h.b16 %v231
    %v1044 = vunpack.c.l.b16 %v232
    %v1045 = vunpack.c.h.b16 %v232
    %v1046 = vunpack.c.l.b16 %v233
    %v1047 = vunpack.c.h.b16 %v233
    %v1048 = vunpack.c.l.b16 %v234
    %v1049 = vunpack.c.h.b16 %v234
    %v1050 = vunpack.c.l.b16 %v235
    %v1051 = vunpack.c.h.b16 %v235
    %v1052 = vunpack.c.l.b16 %v236
    %v1053 = vunpack.c.h.b16 %v236
    %v1054 = vunpack.c.l.b16 %v237
    %v1055 = vunpack.c.h.b16 %v237
    %v1056 = vunpack.c.l.b16 %v238
    %v1057 = vunpack.c.h.b16 %v238
    %v1058 = vunpack.c.l.b16 %v239
    %v1059 = vunpack.c.h.b16 %v239
    %v1060 = vunpack.c.l.b16 %v240
    %v1061 = vunpack.c.h.b16 %v240
    %v1062 = vunpack.c.l.b16 %v241
    %v1063 = vunpack.c.h.b16 %v241
    %v1064 = vunpack.c.l.b16 %v242
    %v1065 = vunpack.c.h.b16 %v242
    %v1066 = vunpack.c.l.b16 %v243
    %v1067 = vunpack.c.h.b16 %v243
    %v1068 = vunpack.c.l.b16 %v244
    %v1069 = vunpack.c.h.b16 %v244
    %v1070 = vunpack.c.l.b16 %v245
    %v1071 = vunpack.c.h.b16 %v245
    %v1072 = vunpack.c.l.b16 %v246
    %v1073 = vunpack.c.h.b16 %v246
    %v1074 = vunpack.c.l.b16 %v247
    %v1075 = vunpack.c.h.b16 %v247
    %v1076 = vunpack.c.l.b16 %v248
    %v1077 = vunpack.c.h.b16 %v248
    %v1078 = vunpack.c.l.b16 %v249
    %v1079 = vunpack.c.h.b16 %v249
    %v1080 = vunpack.c.l.b16 %v250
    %v1081 = vunpack.c.h.b16 %v250
    %v1082 = vunpack.c.l.b16 %v251
    %v1083 = vunpack.c.h.b16 %v251
    %v1084 = vunpack.c.l.b16 %v252
    %v1085 = vunpack.c.h.b16 %v252
    %v1086 = vunpack.c.l.b16 %v253
    %v1087 = vunpack.c.h.b16 %v253
    %v1088 = vunpack.c.l.b16 %v254
    %v1089 = vunpack.c.h.b16 %v254
    %v1090 = vunpack.c.l.b16 %v255
    %v1091 = vunpack.c.h.b16 %v255
    %v1092 = vunpack.c.l.b16 %v256
    %v1093 = vunpack.c.h.b16 %v256
    %v1094 = vunpack.c.l.b16 %v257
    %v1095 = vunpack.c.h.b16 %v257
    %v1096 = vunpack.c.l.b16 %v258
    %v1097 = vunpack.c.h.b16 %v258
    %v1098 = vunpack.c.l.b16 %v259
    %v1099 = vunpack.c.h.b16 %v259
    %v1100 = vunpack.c.l.b16 %v260
    %v1101 = vunpack.c.h.b16 %v260
    %v1102 = vunpack.c.l.b16 %v261
    %v1103 = vunpack.c.h.b16 %v261
    %v1104 = vunpack.c.l.b16 %v262
    %v1105 = vunpack.c.h.b16 %v262
    %v1106 = vunpack.c.l.b16 %v263
    %v1107 = vunpack.c.h.b16 %v263
    %v1108 = vunpack.c.l.b16 %v264
    %v1109 = vunpack.c.h.b16 %v264
    %v1110 = vunpack.c.l.b16 %v265
    %v1111 = vunpack.c.h.b16 %v265
    %v1112 = vunpack.c.l.b16 %v266
    %v1113 = vunpack.c.h.b16 %v266
    %v1114 = vunpack.c.l.b16 %v267
    %v1115 = vunpack.c.h.b16 %v267
    %v1116 = vunpack.c.l.b16 %v268
    %v1117 = vunpack.c.h.b16 %v268
    %v1118 = vunpack.c.l.b16 %v269
    %v1119 = vunpack.c.h.b16 %v269
    %v1120 = vunpack.c.l.b16 %v270
    %v1121 = vunpack.c.h.b16 %v270
    %v1122 = vunpack.c.l.b16 %v271
    %v1123 = vunpack.c.h.b16 %v271
    %v1124 = vunpack.c.l.b16 %v272
    %v1125 = vunpack.c.h.b16 %v272
    %v1126 = vunpack.c.l.b16 %v273
    %v1127 = vunpack.c.h.b16 %v273
    %v1128 = vunpack.c.l.b16 %v274
    %v1129 = vunpack.c.h.b16 %v274
    %v1130 = vunpack.c.l.b16 %v275
    %v1131 = vunpack.c.h.b16 %v275
    %v1132 = vunpack.c.l.b16 %v276
    %v1133 = vunpack.c.h.b16 %v276
    %v1134 = vunpack.c.l.b16 %v277
    %v1135 = vunpack.c.h.b16 %v277
    %v1136 = vunpack.c.l.b16 %v278
    %v1137 = vunpack.c.h.b16 %v278
    %v1138 = vpack.c.b16 %v642, %v626
    %v1139 = vpack.c.b16 %v643, %v627
    %v1140 = vpack.c.b16 %v644, %v628
    %v1141 = vpack.c.b16 %v645, %v629
    %v1142 = vpack.c.b16 %v646, %v630
    %v1143 = vpack.c.b16 %v647, %v631
    %v1144 = vpack.c.b16 %v648, %v632
    %v1145 = vpack.c.b16 %v649, %v633
    %v1146 = vpack.c.b16 %v650, %v634
    %v1147 = vpack.c.b16 %v651, %v635
    %v1148 = vpack.c.b16 %v652, %v636
    %v1149 = vpack.c.b16 %v653, %v637
    %v1150 = vpack.c.b16 %v654, %v638
    %v1151 = vpack.c.b16 %v655, %v639
    %v1152 = vpack.c.b16 %v656, %v640
    %v1153 = vpack.c.b16 %v657, %v641
    %v1154 = vpack.c.b16 %v674, %v658
    %v1155 = vpack.c.b16 %v675, %v659
    %v1156 = vpack.c.b16 %v676, %v660
    %v1157 = vpack.c.b16 %v677, %v661
    %v1158 = vpack.c.b16 %v678, %v662
    %v1159 = vpack.c.b16 %v679, %v663
    %v1160 = vpack.c.b16 %v680, %v664
    %v1161 = vpack.c.b16 %v681, %v665
    %v1162 = vpack.c.b16 %v682, %v666
    %v1163 = vpack.c.b16 %v683, %v667
    %v1164 = vpack.c.b16 %v684, %v668
    %v1165 = vpack.c.b16 %v685, %v669
    %v1166 = vpack.c.b16 %v686, %v670
    %v1167 = vpack.c.b16 %v687, %v671
    %v1168 = vpack.c.b16 %v688, %v672
    %v1169 = vpack.c.b16 %v689, %v673
    %v1170 = vpack.c.b16 %v706, %v690
    %v1171 = vpack.c.b16 %v707, %v691
    %v1172 = vpack.c.b16 %v708, %v692
    %v1173 = vpack.c.b16 %v709, %v693
    %v1174 = vpack.c.b16 %v710, %v694
    %v1175 = vpack.c.b16 %v711, %v695
    %v1176 = vpack.c.b16 %v712, %v696
    %v1177 = vpack.c.b16 %v713, %v697
    %v1178 = vpack.c.b16 %v714, %v698
    %v1179 = vpack.c.b16 %v715, %v699
    %v1180 = vpack.c.b16 %v716, %v700
    %v1181 = vpack.c.b16 %v717, %v701
    %v1182 = vpack.c.b16 %v718, %v702
    %v1183 = vpack.c.b16 %v719, %v703
    %v1184 = vpack.c.b16 %v720, %v704
    %v1185 = vpack.c.b16 %v721, %v705
    %v1186 = vpack.c.b16 %v738, %v722
    %v1187 = vpack.c.b16 %v739, %v723
    %v1188 = vpack.c.b16 %v740, %v724
    %v1189 = vpack.c.b16 %v741, %v725
    %v1190 = vpack.c.b16 %v742, %v726
    %v1191 = vpack.c.b16 %v743, %v727
    %v1192 = vpack.c.b16 %v744, %v728
    %v1193 = vpack.c.b16 %v745, %v729
    %v1194 = vpack.c.b16 %v746, %v730
    %v1195 = vpack.c.b16 %v747, %v731
    %v1196 = vpack.c.b16 %v748, %v732
    %v1197 = vpack.c.b16 %v749, %v733
    %v1198 = vpack.c.b16 %v750, %v734
    %v1199 = vpack.c.b16 %v751, %v735
    %v1200 = vpack.c.b16 %v752, %v736
    %v1201 = vpack.c.b16 %v753, %v737
    %v1202 = vpack.c.b16 %v770, %v754
    %v1203 = vpack.c.b16 %v771, %v755
    %v1204 = vpack.c.b16 %v772, %v756
    %v1205 = vpack.c.b16 %v773, %v757
    %v1206 = vpack.c.b16 %v774, %v758
    %v1207 = vpack.c.b16 %v775, %v759
    %v1208 = vpack.c.b16 %v776, %v760
    %v1209 = vpack.c.b16 %v777, %v761
    %v1210 = vpack.c.b16 %v778, %v762
    %v1211 = vpack.c.b16 %v779, %v763
    %v1212 = vpack.c.b16 %v780, %v764
    %v1213 = vpack.c.b16 %v781, %v765
    %v1214 = vpack.c.b16 %v782, %v766
    %v1215 = vpack.c.b16 %v783, %v767
    %v1216 = vpack.c.b16 %v784, %v768
    %v1217 = vpack.c.b16 %v785, %v769
    %v1218 = vpack.c.b16 %v802, %v786
    %v1219 = vpack.c.b16 %v803, %v787
    %v1220 = vpack.c.b16 %v804, %v788
    %v1221 = vpack.c.b16 %v805, %v789
    %v1222 = vpack.c.b16 %v806, %v790
    %v1223 = vpack.c.b16 %v807, %v791
    %v1224 = vpack.c.b16 %v808, %v792
    %v1225 = vpack.c.b16 %v809, %v793
    %v1226 = vpack.c.b16 %v810, %v794
    %v1227 = vpack.c.b16 %v811, %v795
    %v1228 = vpack.c.b16 %v812, %v796
    %v1229 = vpack.c.b16 %v813, %v797
    %v1230 = vpack.c.b16 %v814, %v798
    %v1231 = vpack.c.b16 %v815, %v799
    %v1232 = vpack.c.b16 %v816, %v800
    %v1233 = vpack.c.b16 %v817, %v801
    %v1234 = vpack.c.b16 %v834, %v818
    %v1235 = vpack.c.b16 %v835, %v819
    %v1236 = vpack.c.b16 %v836, %v820
    %v1237 = vpack.c.b16 %v837, %v821
    %v1238 = vpack.c.b16 %v838, %v822
    %v1239 = vpack.c.b16 %v839, %v823
    %v1240 = vpack.c.b16 %v840, %v824
    %v1241 = vpack.c.b16 %v841, %v825
    %v1242 = vpack.c.b16 %v842, %v826
    %v1243 = vpack.c.b16 %v843, %v827
    %v1244 = vpack.c.b16 %v844, %v828
    %v1245 = vpack.c.b16 %v845, %v829
    %v1246 = vpack.c.b16 %v846, %v830
    %v1247 = vpack.c.b16 %v847, %v831
    %v1248 = vpack.c.b16 %v848, %v832
    %v1249 = vpack.c.b16 %v849, %v833
    %v1250 = vpack.c.b16 %v866, %v850
    %v1251 = vpack.c.b16 %v867, %v851
    %v1252 = vpack.c.b16 %v868, %v852
    %v1253 = vpack.c.b16 %v869, %v853
    %v1254 = vpack.c.b16 %v870, %v854
    %v1255 = vpack.c.b16 %v871, %v855
    %v1256 = vpack.c.b16 %v872, %v856
    %v1257 = vpack.c.b16 %v873, %v857
    %v1258 = vpack.c.b16 %v874, %v858
    %v1259 = vpack.c.b16 %v875, %v859
    %v1260 = vpack.c.b16 %v876, %v860
    %v1261 = vpack.c.b16 %v877, %v861
    %v1262 = vpack.c.b16 %v878, %v862
    %v1263 = vpack.c.b16 %v879, %v863
    %v1264 = vpack.c.b16 %v880, %v864
    %v1265 = vpack.c.b16 %v881, %v865
    %v1266 = vpack.c.b16 %v898, %v882
    %v1267 = vpack.c.b16 %v899, %v883
    %v1268 = vpack.c.b16 %v900, %v884
    %v1269 = vpack.c.b16 %v901, %v885
    %v1270 = vpack.c.b16 %v902, %v886
    %v1271 = vpack.c.b16 %v903, %v887
    %v1272 = vpack.c.b16 %v904, %v888
    %v1273 = vpack.c.b16 %v905, %v889
    %v1274 = vpack.c.b16 %v906, %v890
    %v1275 = vpack.c.b16 %v907, %v891
    %v1276 = vpack.c.b16 %v908, %v892
    %v1277 = vpack.c.b16 %v909, %v893
    %v1278 = vpack.c.b16 %v910, %v894
    %v1279 = vpack.c.b16 %v911, %v895
    %v1280 = vpack.c.b16 %v912, %v896
    %v1281 = vpack.c.b16 %v913, %v897
    %v1282 = vpack.c.b16 %v930, %v914
    %v1283 = vpack.c.b16 %v931, %v915
    %v1284 = vpack.c.b16 %v932, %v916
    %v1285 = vpack.c.b16 %v933, %v917
    %v1286 = vpack.c.b16 %v934, %v918
    %v1287 = vpack.c.b16 %v935, %v919
    %v1288 = vpack.c.b16 %v936, %v920
    %v1289 = vpack.c.b16 %v937, %v921
    %v1290 = vpack.c.b16 %v938, %v922
    %v1291 = vpack.c.b16 %v939, %v923
    %v1292 = vpack.c.b16 %v940, %v924
    %v1293 = vpack.c.b16 %v941, %v925
    %v1294 = vpack.c.b16 %v942, %v926
    %v1295 = vpack.c.b16 %v943, %v927
    %v1296 = vpack.c.b16 %v944, %v928
    %v1297 = vpack.c.b16 %v945, %v929
    %v1298 = vpack.c.b16 %v962, %v946
    %v1299 = vpack.c.b16 %v963, %v947
    %v1300 = vpack.c.b16 %v964, %v948
    %v1301 = vpack.c.b16 %v965, %v949
    %v1302 = vpack.c.b16 %v966, %v950
    %v1303 = vpack.c.b16 %v967, %v951
    %v1304 = vpack.c.b16 %v968, %v952
    %v1305 = vpack.c.b16 %v969, %v953
    %v1306 = vpack.c.b16 %v970, %v954
    %v1307 = vpack.c.b16 %v971, %v955
    %v1308 = vpack.c.b16 %v972, %v956
    %v1309 = vpack.c.b16 %v973, %v957
    %v1310 = vpack.c.b16 %v974, %v958
    %v1311 = vpack.c.b16 %v975, %v959
    %v1312 = vpack.c.b16 %v976, %v960
    %v1313 = vpack.c.b16 %v977, %v961
    %v1314 = vpack.c.b16 %v994, %v978
    %v1315 = vpack.c.b16 %v995, %v979
    %v1316 = vpack.c.b16 %v996, %v980
    %v1317 = vpack.c.b16 %v997, %v981
    %v1318 = vpack.c.b16 %v998, %v982
    %v1319 = vpack.c.b16 %v999, %v983
    %v1320 = vpack.c.b16 %v1000, %v984
    %v1321 = vpack.c.b16 %v1001, %v985
    %v1322 = vpack.c.b16 %v1002, %v986
    %v1323 = vpack.c.b16 %v1003, %v987
    %v1324 = vpack.c.b16 %v1004, %v988
    %v1325 = vpack.c.b16 %v1005, %v989
    %v1326 = vpack.c.b16 %v1006, %v990
    %v1327 = vpack.c.b16 %v1007, %v991
    %v1328 = vpack.c.b16 %v1008, %v992
    %v1329 = vpack.c.b16 %v1009, %v993
    %v1330 = vpack.c.b16 %v1026, %v1010
    %v1331 = vpack.c.b16 %v1027, %v1011
    %v1332 = vpack.c.b16 %v1028, %v1012
    %v1333 = vpack.c.b16 %v1029, %v1013
    %v1334 = vpack.c.b16 %v1030, %v1014
    %v1335 = vpack.c.b16 %v1031, %v1015
    %v1336 = vpack.c.b16 %v1032, %v1016
    %v1337 = vpack.c.b16 %v1033, %v1017
    %v1338 = vpack.c.b16 %v1034, %v1018
    %v1339 = vpack.c.b16 %v1035, %v1019
    %v1340 = vpack.c.b16 %v1036, %v1020
    %v1341 = vpack.c.b16 %v1037, %v1021
    %v1342 = vpack.c.b16 %v1038, %v1022
    %v1343 = vpack.c.b16 %v1039, %v1023
    %v1344 = vpack.c.b16 %v1040, %v1024
    %v1345 = vpack.c.b16 %v1041, %v1025
    %v1346 = vpack.c.b16 %v1058, %v1042
    %v1347 = vpack.c.b16 %v1059, %v1043
    %v1348 = vpack.c.b16 %v1060, %v1044
    %v1349 = vpack.c.b16 %v1061, %v1045
    %v1350 = vpack.c.b16 %v1062, %v1046
    %v1351 = vpack.c.b16 %v1063, %v1047
    %v1352 = vpack.c.b16 %v1064, %v1048
    %v1353 = vpack.c.b16 %v1065, %v1049
    %v1354 = vpack.c.b16 %v1066, %v1050
    %v1355 = vpack.c.b16 %v1067, %v1051
    %v1356 = vpack.c.b16 %v1068, %v1052
    %v1357 = vpack.c.b16 %v1069, %v1053
    %v1358 = vpack.c.b16 %v1070, %v1054
    %v1359 = vpack.c.b16 %v1071, %v1055
    %v1360 = vpack.c.b16 %v1072, %v1056
    %v1361 = vpack.c.b16 %v1073, %v1057
    %v1362 = vpack.c.b16 %v1090, %v1074
    %v1363 = vpack.c.b16 %v1091, %v1075
    %v1364 = vpack.c.b16 %v1092, %v1076
    %v1365 = vpack.c.b16 %v1093, %v1077
    %v1366 = vpack.c.b16 %v1094, %v1078
    %v1367 = vpack.c.b16 %v1095, %v1079
    %v1368 = vpack.c.b16 %v1096, %v1080
    %v1369 = vpack.c.b16 %v1097, %v1081
    %v1370 = vpack.c.b16 %v1098, %v1082
    %v1371 = vpack.c.b16 %v1099, %v1083
    %v1372 = vpack.c.b16 %v1100, %v1084
    %v1373 = vpack.c.b16 %v1101, %v1085
    %v1374 = vpack.c.b16 %v1102, %v1086
    %v1375 = vpack.c.b16 %v1103, %v1087
    %v1376 = vpack.c.b16 %v1104, %v1088
    %v1377 = vpack.c.b16 %v1105, %v1089
    %v1378 = vpack.c.b16 %v1122, %v1106
    %v1379 = vpack.c.b16 %v1123, %v1107
    %v1380 = vpack.c.b16 %v1124, %v1108
    %v1381 = vpack.c.b16 %v1125, %v1109
    %v1382 = vpack.c.b16 %v1126, %v1110
    %v1383 = vpack.c.b16 %v1127, %v1111
    %v1384 = vpack.c.b16 %v1128, %v1112
    %v1385 = vpack.c.b16 %v1129, %v1113
    %v1386 = vpack.c.b16 %v1130, %v1114
    %v1387 = vpack.c.b16 %v1131, %v1115
    %v1388 = vpack.c.b16 %v1132, %v1116
    %v1389 = vpack.c.b16 %v1133, %v1117
    %v1390 = vpack.c.b16 %v1134, %v1118
    %v1391 = vpack.c.b16 %v1135, %v1119
    %v1392 = vpack.c.b16 %v1136, %v1120
    %v1393 = vpack.c.b16 %v1137, %v1121
    %1650 = vmatprep.subr.bf16.mxu0 %v1139
    %1651 = vmatpush1.bf16.msra.mxu0 %v1138
    %1652 = vmatprep.subr.bf16.mxu0 %v1155
    %1653 = vmatpush1.bf16.msra.mxu0 %v1154
    %1654 = vmatprep.subr.bf16.mxu0 %v1171
    %1655 = vmatpush1.bf16.msra.mxu0 %v1170
    %1656 = vmatprep.subr.bf16.mxu0 %v1187
    %1657 = vmatpush1.bf16.msra.mxu0 %v1186
    %1658 = vmatprep.subr.bf16.mxu0 %v1203
    %1659 = vmatpush1.bf16.msra.mxu0 %v1202
    %1660 = vmatprep.subr.bf16.mxu0 %v1219
    %1661 = vmatpush1.bf16.msra.mxu0 %v1218
    %1662 = vmatprep.subr.bf16.mxu0 %v1235
    %1663 = vmatpush1.bf16.msra.mxu0 %v1234
    %1664 = vmatprep.subr.bf16.mxu0 %v1251
    %1665 = vmatpush1.bf16.msra.mxu0 %v1250
    %1666 = vmatprep.subr.bf16.mxu0 %v1267
    %1667 = vmatpush1.bf16.msra.mxu0 %v1266
    %1668 = vmatprep.subr.bf16.mxu0 %v1283
    %1669 = vmatpush1.bf16.msra.mxu0 %v1282
    %1670 = vmatprep.subr.bf16.mxu0 %v1299
    %1671 = vmatpush1.bf16.msra.mxu0 %v1298
    %1672 = vmatprep.subr.bf16.mxu0 %v1315
    %1673 = vmatpush1.bf16.msra.mxu0 %v1314
    %1674 = vmatprep.subr.bf16.mxu0 %v1331
    %1675 = vmatpush1.bf16.msra.mxu0 %v1330
    %1676 = vmatprep.subr.bf16.mxu0 %v1347
    %1677 = vmatpush1.bf16.msra.mxu0 %v1346
    %1678 = vmatprep.subr.bf16.mxu0 %v1363
    %1679 = vmatpush1.bf16.msra.mxu0 %v1362
    %1680 = vmatprep.subr.bf16.mxu0 %v1379
    %1681 = vmatpush1.bf16.msra.mxu0 %v1378
    %1682 = vmatprep.mubr.bf16.mxu0 %v367
    %1683 = vmatmul.mubr.bf16.gmra.mrb[0].mxu0 %v366
    %v1684 = vpop.f32.mrb[0].mxu0
    %v1685 = vadd.f32 %v286, %v1684
    %v1686 = vpop.f32.mrb[0].mxu0
    %v1687 = vadd.f32 %v290, %v1686
    %v1688 = vpop.f32.mrb[0].mxu0
    %v1689 = vpop.f32.mrb[0].mxu0
    %1690 = vdwg.mxu0
    %1691 = vmatprep.subr.bf16.mxu0 %v1141
    %1692 = vmatpush1.bf16.msra.mxu0 %v1140
    %1693 = vmatprep.subr.bf16.mxu0 %v1157
    %1694 = vmatpush1.bf16.msra.mxu0 %v1156
    %1695 = vmatprep.subr.bf16.mxu0 %v1173
    %1696 = vmatpush1.bf16.msra.mxu0 %v1172
    %1697 = vmatprep.subr.bf16.mxu0 %v1189
    %1698 = vmatpush1.bf16.msra.mxu0 %v1188
    %1699 = vmatprep.subr.bf16.mxu0 %v1205
    %1700 = vmatpush1.bf16.msra.mxu0 %v1204
    %1701 = vmatprep.subr.bf16.mxu0 %v1221
    %1702 = vmatpush1.bf16.msra.mxu0 %v1220
    %1703 = vmatprep.subr.bf16.mxu0 %v1237
    %1704 = vmatpush1.bf16.msra.mxu0 %v1236
    %1705 = vmatprep.subr.bf16.mxu0 %v1253
    %1706 = vmatpush1.bf16.msra.mxu0 %v1252
    %1707 = vmatprep.subr.bf16.mxu0 %v1269
    %1708 = vmatpush1.bf16.msra.mxu0 %v1268
    %1709 = vmatprep.subr.bf16.mxu0 %v1285
    %1710 = vmatpush1.bf16.msra.mxu0 %v1284
    %1711 = vmatprep.subr.bf16.mxu0 %v1301
    %1712 = vmatpush1.bf16.msra.mxu0 %v1300
    %1713 = vmatprep.subr.bf16.mxu0 %v1317
    %1714 = vmatpush1.bf16.msra.mxu0 %v1316
    %1715 = vmatprep.subr.bf16.mxu0 %v1333
    %1716 = vmatpush1.bf16.msra.mxu0 %v1332
    %1717 = vmatprep.subr.bf16.mxu0 %v1349
    %1718 = vmatpush1.bf16.msra.mxu0 %v1348
    %1719 = vmatprep.subr.bf16.mxu0 %v1365
    %1720 = vmatpush1.bf16.msra.mxu0 %v1364
    %1721 = vmatprep.subr.bf16.mxu0 %v1381
    %1722 = vmatpush1.bf16.msra.mxu0 %v1380
    %1723 = vmatprep.mubr.bf16.mxu0 %v367
    %1724 = vmatmul.mubr.bf16.gmra.mrb[0].mxu0 %v366
    %v1725 = vpop.f32.mrb[0].mxu0
    %v1726 = vadd.f32 %v294, %v1725
    %v1727 = vpop.f32.mrb[0].mxu0
    %v1728 = vadd.f32 %v298, %v1727
    %v1729 = vpop.f32.mrb[0].mxu0
    %v1730 = vpop.f32.mrb[0].mxu0
    %1731 = vdwg.mxu0
    %1732 = vmatprep.subr.bf16.mxu0 %v1143
    %1733 = vmatpush1.bf16.msra.mxu0 %v1142
    %1734 = vmatprep.subr.bf16.mxu0 %v1159
    %1735 = vmatpush1.bf16.msra.mxu0 %v1158
    %1736 = vmatprep.subr.bf16.mxu0 %v1175
    %1737 = vmatpush1.bf16.msra.mxu0 %v1174
    %1738 = vmatprep.subr.bf16.mxu0 %v1191
    %1739 = vmatpush1.bf16.msra.mxu0 %v1190
    %1740 = vmatprep.subr.bf16.mxu0 %v1207
    %1741 = vmatpush1.bf16.msra.mxu0 %v1206
    %1742 = vmatprep.subr.bf16.mxu0 %v1223
    %1743 = vmatpush1.bf16.msra.mxu0 %v1222
    %1744 = vmatprep.subr.bf16.mxu0 %v1239
    %1745 = vmatpush1.bf16.msra.mxu0 %v1238
    %1746 = vmatprep.subr.bf16.mxu0 %v1255
    %1747 = vmatpush1.bf16.msra.mxu0 %v1254
    %1748 = vmatprep.subr.bf16.mxu0 %v1271
    %1749 = vmatpush1.bf16.msra.mxu0 %v1270
    %1750 = vmatprep.subr.bf16.mxu0 %v1287
    %1751 = vmatpush1.bf16.msra.mxu0 %v1286
    %1752 = vmatprep.subr.bf16.mxu0 %v1303
    %1753 = vmatpush1.bf16.msra.mxu0 %v1302
    %1754 = vmatprep.subr.bf16.mxu0 %v1319
    %1755 = vmatpush1.bf16.msra.mxu0 %v1318
    %1756 = vmatprep.subr.bf16.mxu0 %v1335
    %1757 = vmatpush1.bf16.msra.mxu0 %v1334
    %1758 = vmatprep.subr.bf16.mxu0 %v1351
    %1759 = vmatpush1.bf16.msra.mxu0 %v1350
    %1760 = vmatprep.subr.bf16.mxu0 %v1367
    %1761 = vmatpush1.bf16.msra.mxu0 %v1366
    %1762 = vmatprep.subr.bf16.mxu0 %v1383
    %1763 = vmatpush1.bf16.msra.mxu0 %v1382
    %1764 = vmatprep.mubr.bf16.mxu0 %v367
    %1765 = vmatmul.mubr.bf16.gmra.mrb[0].mxu0 %v366
    %v1766 = vpop.f32.mrb[0].mxu0
    %v1767 = vadd.f32 %v302, %v1766
    %v1768 = vpop.f32.mrb[0].mxu0
    %v1769 = vadd.f32 %v306, %v1768
    %v1770 = vpop.f32.mrb[0].mxu0
    %v1771 = vpop.f32.mrb[0].mxu0
    %1772 = vdwg.mxu0
    %1773 = vmatprep.subr.bf16.mxu0 %v1145
    %1774 = vmatpush1.bf16.msra.mxu0 %v1144
    %1775 = vmatprep.subr.bf16.mxu0 %v1161
    %1776 = vmatpush1.bf16.msra.mxu0 %v1160
    %1777 = vmatprep.subr.bf16.mxu0 %v1177
    %1778 = vmatpush1.bf16.msra.mxu0 %v1176
    %1779 = vmatprep.subr.bf16.mxu0 %v1193
    %1780 = vmatpush1.bf16.msra.mxu0 %v1192
    %1781 = vmatprep.subr.bf16.mxu0 %v1209
    %1782 = vmatpush1.bf16.msra.mxu0 %v1208
    %1783 = vmatprep.subr.bf16.mxu0 %v1225
    %1784 = vmatpush1.bf16.msra.mxu0 %v1224
    %1785 = vmatprep.subr.bf16.mxu0 %v1241
    %1786 = vmatpush1.bf16.msra.mxu0 %v1240
    %1787 = vmatprep.subr.bf16.mxu0 %v1257
    %1788 = vmatpush1.bf16.msra.mxu0 %v1256
    %1789 = vmatprep.subr.bf16.mxu0 %v1273
    %1790 = vmatpush1.bf16.msra.mxu0 %v1272
    %1791 = vmatprep.subr.bf16.mxu0 %v1289
    %1792 = vmatpush1.bf16.msra.mxu0 %v1288
    %1793 = vmatprep.subr.bf16.mxu0 %v1305
    %1794 = vmatpush1.bf16.msra.mxu0 %v1304
    %1795 = vmatprep.subr.bf16.mxu0 %v1321
    %1796 = vmatpush1.bf16.msra.mxu0 %v1320
    %1797 = vmatprep.subr.bf16.mxu0 %v1337
    %1798 = vmatpush1.bf16.msra.mxu0 %v1336
    %1799 = vmatprep.subr.bf16.mxu0 %v1353
    %1800 = vmatpush1.bf16.msra.mxu0 %v1352
    %1801 = vmatprep.subr.bf16.mxu0 %v1369
    %1802 = vmatpush1.bf16.msra.mxu0 %v1368
    %1803 = vmatprep.subr.bf16.mxu0 %v1385
    %1804 = vmatpush1.bf16.msra.mxu0 %v1384
    %1805 = vmatprep.mubr.bf16.mxu0 %v367
    %1806 = vmatmul.mubr.bf16.gmra.mrb[0].mxu0 %v366
    %v1807 = vpop.f32.mrb[0].mxu0
    %v1808 = vadd.f32 %v310, %v1807
    %v1809 = vpop.f32.mrb[0].mxu0
    %v1810 = vadd.f32 %v314, %v1809
    %v1811 = vpop.f32.mrb[0].mxu0
    %v1812 = vpop.f32.mrb[0].mxu0
    %1813 = vdwg.mxu0
    %1814 = vmatprep.subr.bf16.mxu0 %v1147
    %1815 = vmatpush1.bf16.msra.mxu0 %v1146
    %1816 = vmatprep.subr.bf16.mxu0 %v1163
    %1817 = vmatpush1.bf16.msra.mxu0 %v1162
    %1818 = vmatprep.subr.bf16.mxu0 %v1179
    %1819 = vmatpush1.bf16.msra.mxu0 %v1178
    %1820 = vmatprep.subr.bf16.mxu0 %v1195
    %1821 = vmatpush1.bf16.msra.mxu0 %v1194
    %1822 = vmatprep.subr.bf16.mxu0 %v1211
    %1823 = vmatpush1.bf16.msra.mxu0 %v1210
    %1824 = vmatprep.subr.bf16.mxu0 %v1227
    %1825 = vmatpush1.bf16.msra.mxu0 %v1226
    %1826 = vmatprep.subr.bf16.mxu0 %v1243
    %1827 = vmatpush1.bf16.msra.mxu0 %v1242
    %1828 = vmatprep.subr.bf16.mxu0 %v1259
    %1829 = vmatpush1.bf16.msra.mxu0 %v1258
    %1830 = vmatprep.subr.bf16.mxu0 %v1275
    %1831 = vmatpush1.bf16.msra.mxu0 %v1274
    %1832 = vmatprep.subr.bf16.mxu0 %v1291
    %1833 = vmatpush1.bf16.msra.mxu0 %v1290
    %1834 = vmatprep.subr.bf16.mxu0 %v1307
    %1835 = vmatpush1.bf16.msra.mxu0 %v1306
    %1836 = vmatprep.subr.bf16.mxu0 %v1323
    %1837 = vmatpush1.bf16.msra.mxu0 %v1322
    %1838 = vmatprep.subr.bf16.mxu0 %v1339
    %1839 = vmatpush1.bf16.msra.mxu0 %v1338
    %1840 = vmatprep.subr.bf16.mxu0 %v1355
    %1841 = vmatpush1.bf16.msra.mxu0 %v1354
    %1842 = vmatprep.subr.bf16.mxu0 %v1371
    %1843 = vmatpush1.bf16.msra.mxu0 %v1370
    %1844 = vmatprep.subr.bf16.mxu0 %v1387
    %1845 = vmatpush1.bf16.msra.mxu0 %v1386
    %1846 = vmatprep.mubr.bf16.mxu0 %v367
    %1847 = vmatmul.mubr.bf16.gmra.mrb[0].mxu0 %v366
    %v1848 = vpop.f32.mrb[0].mxu0
    %v1849 = vadd.f32 %v318, %v1848
    %v1850 = vpop.f32.mrb[0].mxu0
    %v1851 = vadd.f32 %v322, %v1850
    %v1852 = vpop.f32.mrb[0].mxu0
    %v1853 = vpop.f32.mrb[0].mxu0
    %1854 = vdwg.mxu0
    %1855 = vmatprep.subr.bf16.mxu0 %v1149
    %1856 = vmatpush1.bf16.msra.mxu0 %v1148
    %1857 = vmatprep.subr.bf16.mxu0 %v1165
    %1858 = vmatpush1.bf16.msra.mxu0 %v1164
    %1859 = vmatprep.subr.bf16.mxu0 %v1181
    %1860 = vmatpush1.bf16.msra.mxu0 %v1180
    %1861 = vmatprep.subr.bf16.mxu0 %v1197
    %1862 = vmatpush1.bf16.msra.mxu0 %v1196
    %1863 = vmatprep.subr.bf16.mxu0 %v1213
    %1864 = vmatpush1.bf16.msra.mxu0 %v1212
    %1865 = vmatprep.subr.bf16.mxu0 %v1229
    %1866 = vmatpush1.bf16.msra.mxu0 %v1228
    %1867 = vmatprep.subr.bf16.mxu0 %v1245
    %1868 = vmatpush1.bf16.msra.mxu0 %v1244
    %1869 = vmatprep.subr.bf16.mxu0 %v1261
    %1870 = vmatpush1.bf16.msra.mxu0 %v1260
    %1871 = vmatprep.subr.bf16.mxu0 %v1277
    %1872 = vmatpush1.bf16.msra.mxu0 %v1276
    %1873 = vmatprep.subr.bf16.mxu0 %v1293
    %1874 = vmatpush1.bf16.msra.mxu0 %v1292
    %1875 = vmatprep.subr.bf16.mxu0 %v1309
    %1876 = vmatpush1.bf16.msra.mxu0 %v1308
    %1877 = vmatprep.subr.bf16.mxu0 %v1325
    %1878 = vmatpush1.bf16.msra.mxu0 %v1324
    %1879 = vmatprep.subr.bf16.mxu0 %v1341
    %1880 = vmatpush1.bf16.msra.mxu0 %v1340
    %1881 = vmatprep.subr.bf16.mxu0 %v1357
    %1882 = vmatpush1.bf16.msra.mxu0 %v1356
    %1883 = vmatprep.subr.bf16.mxu0 %v1373
    %1884 = vmatpush1.bf16.msra.mxu0 %v1372
    %1885 = vmatprep.subr.bf16.mxu0 %v1389
    %1886 = vmatpush1.bf16.msra.mxu0 %v1388
    %1887 = vmatprep.mubr.bf16.mxu0 %v367
    %1888 = vmatmul.mubr.bf16.gmra.mrb[0].mxu0 %v366
    %v1889 = vpop.f32.mrb[0].mxu0
    %v1890 = vadd.f32 %v326, %v1889
    %v1891 = vpop.f32.mrb[0].mxu0
    %v1892 = vadd.f32 %v330, %v1891
    %v1893 = vpop.f32.mrb[0].mxu0
    %v1894 = vpop.f32.mrb[0].mxu0
    %1895 = vdwg.mxu0
    %1896 = vmatprep.subr.bf16.mxu0 %v1151
    %1897 = vmatpush1.bf16.msra.mxu0 %v1150
    %1898 = vmatprep.subr.bf16.mxu0 %v1167
    %1899 = vmatpush1.bf16.msra.mxu0 %v1166
    %1900 = vmatprep.subr.bf16.mxu0 %v1183
    %1901 = vmatpush1.bf16.msra.mxu0 %v1182
    %1902 = vmatprep.subr.bf16.mxu0 %v1199
    %1903 = vmatpush1.bf16.msra.mxu0 %v1198
    %1904 = vmatprep.subr.bf16.mxu0 %v1215
    %1905 = vmatpush1.bf16.msra.mxu0 %v1214
    %1906 = vmatprep.subr.bf16.mxu0 %v1231
    %1907 = vmatpush1.bf16.msra.mxu0 %v1230
    %1908 = vmatprep.subr.bf16.mxu0 %v1247
    %1909 = vmatpush1.bf16.msra.mxu0 %v1246
    %1910 = vmatprep.subr.bf16.mxu0 %v1263
    %1911 = vmatpush1.bf16.msra.mxu0 %v1262
    %1912 = vmatprep.subr.bf16.mxu0 %v1279
    %1913 = vmatpush1.bf16.msra.mxu0 %v1278
    %1914 = vmatprep.subr.bf16.mxu0 %v1295
    %1915 = vmatpush1.bf16.msra.mxu0 %v1294
    %1916 = vmatprep.subr.bf16.mxu0 %v1311
    %1917 = vmatpush1.bf16.msra.mxu0 %v1310
    %1918 = vmatprep.subr.bf16.mxu0 %v1327
    %1919 = vmatpush1.bf16.msra.mxu0 %v1326
    %1920 = vmatprep.subr.bf16.mxu0 %v1343
    %1921 = vmatpush1.bf16.msra.mxu0 %v1342
    %1922 = vmatprep.subr.bf16.mxu0 %v1359
    %1923 = vmatpush1.bf16.msra.mxu0 %v1358
    %1924 = vmatprep.subr.bf16.mxu0 %v1375
    %1925 = vmatpush1.bf16.msra.mxu0 %v1374
    %1926 = vmatprep.subr.bf16.mxu0 %v1391
    %1927 = vmatpush1.bf16.msra.mxu0 %v1390
    %1928 = vmatprep.mubr.bf16.mxu0 %v367
    %1929 = vmatmul.mubr.bf16.gmra.mrb[0].mxu0 %v366
    %v1930 = vpop.f32.mrb[0].mxu0
    %v1931 = vadd.f32 %v334, %v1930
    %v1932 = vpop.f32.mrb[0].mxu0
    %v1933 = vadd.f32 %v338, %v1932
    %v1934 = vpop.f32.mrb[0].mxu0
    %v1935 = vpop.f32.mrb[0].mxu0
    %1936 = vdwg.mxu0
    %1937 = vmatprep.subr.bf16.mxu0 %v1153
    %1938 = vmatpush1.bf16.msra.mxu0 %v1152
    %1939 = vmatprep.subr.bf16.mxu0 %v1169
    %1940 = vmatpush1.bf16.msra.mxu0 %v1168
    %1941 = vmatprep.subr.bf16.mxu0 %v1185
    %1942 = vmatpush1.bf16.msra.mxu0 %v1184
    %1943 = vmatprep.subr.bf16.mxu0 %v1201
    %1944 = vmatpush1.bf16.msra.mxu0 %v1200
    %1945 = vmatprep.subr.bf16.mxu0 %v1217
    %1946 = vmatpush1.bf16.msra.mxu0 %v1216
    %1947 = vmatprep.subr.bf16.mxu0 %v1233
    %1948 = vmatpush1.bf16.msra.mxu0 %v1232
    %1949 = vmatprep.subr.bf16.mxu0 %v1249
    %1950 = vmatpush1.bf16.msra.mxu0 %v1248
    %1951 = vmatprep.subr.bf16.mxu0 %v1265
    %1952 = vmatpush1.bf16.msra.mxu0 %v1264
    %1953 = vmatprep.subr.bf16.mxu0 %v1281
    %1954 = vmatpush1.bf16.msra.mxu0 %v1280
    %1955 = vmatprep.subr.bf16.mxu0 %v1297
    %1956 = vmatpush1.bf16.msra.mxu0 %v1296
    %1957 = vmatprep.subr.bf16.mxu0 %v1313
    %1958 = vmatpush1.bf16.msra.mxu0 %v1312
    %1959 = vmatprep.subr.bf16.mxu0 %v1329
    %1960 = vmatpush1.bf16.msra.mxu0 %v1328
    %1961 = vmatprep.subr.bf16.mxu0 %v1345
    %1962 = vmatpush1.bf16.msra.mxu0 %v1344
    %1963 = vmatprep.subr.bf16.mxu0 %v1361
    %1964 = vmatpush1.bf16.msra.mxu0 %v1360
    %1965 = vmatprep.subr.bf16.mxu0 %v1377
    %1966 = vmatpush1.bf16.msra.mxu0 %v1376
    %1967 = vmatprep.subr.bf16.mxu0 %v1393
    %1968 = vmatpush1.bf16.msra.mxu0 %v1392
    %1969 = vmatprep.mubr.bf16.mxu0 %v367
    %1970 = vmatmul.mubr.bf16.gmra.mrb[0].mxu0 %v366
    %v1971 = vpop.f32.mrb[0].mxu0
    %v1972 = vadd.f32 %v342, %v1971
    %v1973 = vpop.f32.mrb[0].mxu0
    %v1974 = vadd.f32 %v346, %v1973
    %v1975 = vpop.f32.mrb[0].mxu0
    %v1976 = vpop.f32.mrb[0].mxu0
    %1977 = vdwg.mxu0
    %v1978 = vmax.f32 %v1685, 0.0
    %v1979 = vmax.f32 %v1687, 0.0
    %v1980 = vmax.f32 %v1726, 0.0
    %v1981 = vmax.f32 %v1728, 0.0
    %v1982 = vmax.f32 %v1767, 0.0
    %v1983 = vmax.f32 %v1769, 0.0
    %v1984 = vmax.f32 %v1808, 0.0
    %v1985 = vmax.f32 %v1810, 0.0
    %v1986 = vmax.f32 %v1849, 0.0
    %v1987 = vmax.f32 %v1851, 0.0
    %v1988 = vmax.f32 %v1890, 0.0
    %v1989 = vmax.f32 %v1892, 0.0
    %v1990 = vmax.f32 %v1931, 0.0
    %v1991 = vmax.f32 %v1933, 0.0
    %v1992 = vmax.f32 %v1972, 0.0
    %v1993 = vmax.f32 %v1974, 0.0
    %v1994 = vpack.c.bf16 %v1978, %v1978
    %v1995 = vpack.c.bf16 %v1979, %v1979
    %v1996 = vpack.c.bf16 %v1980, %v1980
    %v1997 = vpack.c.bf16 %v1981, %v1981
    %v1998 = vpack.c.bf16 %v1982, %v1982
    %v1999 = vpack.c.bf16 %v1983, %v1983
    %v2000 = vpack.c.bf16 %v1984, %v1984
    %v2001 = vpack.c.bf16 %v1985, %v1985
    %v2002 = vpack.c.bf16 %v1986, %v1986
    %v2003 = vpack.c.bf16 %v1987, %v1987
    %v2004 = vpack.c.bf16 %v1988, %v1988
    %v2005 = vpack.c.bf16 %v1989, %v1989
    %v2006 = vpack.c.bf16 %v1990, %v1990
    %v2007 = vpack.c.bf16 %v1991, %v1991
    %v2008 = vpack.c.bf16 %v1992, %v1992
    %v2009 = vpack.c.bf16 %v1993, %v1993
    %v2010 = vld [vmem:[%s3] sm:$0xf]
    %v2011 = vld [vmem:[%s3 + $0x4] sm:$0xf]
    %v2012 = vld [vmem:[%s3 + $0x8] sm:$0xf]
    %v2013 = vld [vmem:[%s3 + $0xc] sm:$0xf]
    %v2014 = vld [vmem:[%s3 + $0x10] sm:$0xf]
    %v2015 = vld [vmem:[%s3 + $0x14] sm:$0xf]
    %v2016 = vld [vmem:[%s3 + $0x18] sm:$0xf]
    %v2017 = vld [vmem:[%s3 + $0x1c] sm:$0xf]
    %v2018 = vld [vmem:[%s3 + $0x20] sm:$0xf]
    %v2019 = vld [vmem:[%s3 + $0x24] sm:$0xf]
    %v2020 = vld [vmem:[%s3 + $0x28] sm:$0xf]
    %v2021 = vld [vmem:[%s3 + $0x2c] sm:$0xf]
    %v2022 = vld [vmem:[%s3 + $0x30] sm:$0xf]
    %v2023 = vld [vmem:[%s3 + $0x34] sm:$0xf]
    %v2024 = vld [vmem:[%s3 + $0x38] sm:$0xf]
    %v2025 = vld [vmem:[%s3 + $0x3c] sm:$0xf]
    %v2026 = vld [vmem:[%s3 + $0x40] sm:$0xf]
    %v2027 = vld [vmem:[%s3 + $0x44] sm:$0xf]
    %v2028 = vld [vmem:[%s3 + $0x48] sm:$0xf]
    %v2029 = vld [vmem:[%s3 + $0x4c] sm:$0xf]
    %v2030 = vld [vmem:[%s3 + $0x50] sm:$0xf]
    %v2031 = vld [vmem:[%s3 + $0x54] sm:$0xf]
    %v2032 = vld [vmem:[%s3 + $0x58] sm:$0xf]
    %v2033 = vld [vmem:[%s3 + $0x5c] sm:$0xf]
    %v2034 = vld [vmem:[%s3 + $0x60] sm:$0xf]
    %v2035 = vld [vmem:[%s3 + $0x64] sm:$0xf]
    %v2036 = vld [vmem:[%s3 + $0x68] sm:$0xf]
    %v2037 = vld [vmem:[%s3 + $0x6c] sm:$0xf]
    %v2038 = vld [vmem:[%s3 + $0x70] sm:$0xf]
    %v2039 = vld [vmem:[%s3 + $0x74] sm:$0xf]
    %v2040 = vld [vmem:[%s3 + $0x78] sm:$0xf]
    %v2041 = vld [vmem:[%s3 + $0x7c] sm:$0xf]
    %v2042 = vld [vmem:[%s3 + $0x80] sm:$0xf]
    %v2043 = vld [vmem:[%s3 + $0x84] sm:$0xf]
    %v2044 = vld [vmem:[%s3 + $0x88] sm:$0xf]
    %v2045 = vld [vmem:[%s3 + $0x8c] sm:$0xf]
    %v2046 = vld [vmem:[%s3 + $0x90] sm:$0xf]
    %v2047 = vld [vmem:[%s3 + $0x94] sm:$0xf]
    %v2048 = vld [vmem:[%s3 + $0x98] sm:$0xf]
    %v2049 = vld [vmem:[%s3 + $0x9c] sm:$0xf]
    %v2050 = vld [vmem:[%s3 + $0xa0] sm:$0xf]
    %v2051 = vld [vmem:[%s3 + $0xa4] sm:$0xf]
    %v2052 = vld [vmem:[%s3 + $0xa8] sm:$0xf]
    %v2053 = vld [vmem:[%s3 + $0xac] sm:$0xf]
    %v2054 = vld [vmem:[%s3 + $0xb0] sm:$0xf]
    %v2055 = vld [vmem:[%s3 + $0xb4] sm:$0xf]
    %v2056 = vld [vmem:[%s3 + $0xb8] sm:$0xf]
    %v2057 = vld [vmem:[%s3 + $0xbc] sm:$0xf]
    %v2058 = vld [vmem:[%s3 + $0xc0] sm:$0xf]
    %v2059 = vld [vmem:[%s3 + $0xc4] sm:$0xf]
    %v2060 = vld [vmem:[%s3 + $0xc8] sm:$0xf]
    %v2061 = vld [vmem:[%s3 + $0xcc] sm:$0xf]
    %v2062 = vld [vmem:[%s3 + $0xd0] sm:$0xf]
    %v2063 = vld [vmem:[%s3 + $0xd4] sm:$0xf]
    %v2064 = vld [vmem:[%s3 + $0xd8] sm:$0xf]
    %v2065 = vld [vmem:[%s3 + $0xdc] sm:$0xf]
    %v2066 = vld [vmem:[%s3 + $0xe0] sm:$0xf]
    %v2067 = vld [vmem:[%s3 + $0xe4] sm:$0xf]
    %v2068 = vld [vmem:[%s3 + $0xe8] sm:$0xf]
    %v2069 = vld [vmem:[%s3 + $0xec] sm:$0xf]
    %v2070 = vld [vmem:[%s3 + $0xf0] sm:$0xf]
    %v2071 = vld [vmem:[%s3 + $0xf4] sm:$0xf]
    %v2072 = vld [vmem:[%s3 + $0xf8] sm:$0xf]
    %v2073 = vld [vmem:[%s3 + $0xfc] sm:$0xf]
    %v2074 = vld [vmem:[%s3 + $0x100] sm:$0xf]
    %v2075 = vld [vmem:[%s3 + $0x104] sm:$0xf]
    %v2076 = vld [vmem:[%s3 + $0x108] sm:$0xf]
    %v2077 = vld [vmem:[%s3 + $0x10c] sm:$0xf]
    %v2078 = vld [vmem:[%s3 + $0x110] sm:$0xf]
    %v2079 = vld [vmem:[%s3 + $0x114] sm:$0xf]
    %v2080 = vld [vmem:[%s3 + $0x118] sm:$0xf]
    %v2081 = vld [vmem:[%s3 + $0x11c] sm:$0xf]
    %v2082 = vld [vmem:[%s3 + $0x120] sm:$0xf]
    %v2083 = vld [vmem:[%s3 + $0x124] sm:$0xf]
    %v2084 = vld [vmem:[%s3 + $0x128] sm:$0xf]
    %v2085 = vld [vmem:[%s3 + $0x12c] sm:$0xf]
    %v2086 = vld [vmem:[%s3 + $0x130] sm:$0xf]
    %v2087 = vld [vmem:[%s3 + $0x134] sm:$0xf]
    %v2088 = vld [vmem:[%s3 + $0x138] sm:$0xf]
    %v2089 = vld [vmem:[%s3 + $0x13c] sm:$0xf]
    %v2090 = vld [vmem:[%s3 + $0x140] sm:$0xf]
    %v2091 = vld [vmem:[%s3 + $0x144] sm:$0xf]
    %v2092 = vld [vmem:[%s3 + $0x148] sm:$0xf]
    %v2093 = vld [vmem:[%s3 + $0x14c] sm:$0xf]
    %v2094 = vld [vmem:[%s3 + $0x150] sm:$0xf]
    %v2095 = vld [vmem:[%s3 + $0x154] sm:$0xf]
    %v2096 = vld [vmem:[%s3 + $0x158] sm:$0xf]
    %v2097 = vld [vmem:[%s3 + $0x15c] sm:$0xf]
    %v2098 = vld [vmem:[%s3 + $0x160] sm:$0xf]
    %v2099 = vld [vmem:[%s3 + $0x164] sm:$0xf]
    %v2100 = vld [vmem:[%s3 + $0x168] sm:$0xf]
    %v2101 = vld [vmem:[%s3 + $0x16c] sm:$0xf]
    %v2102 = vld [vmem:[%s3 + $0x170] sm:$0xf]
    %v2103 = vld [vmem:[%s3 + $0x174] sm:$0xf]
    %v2104 = vld [vmem:[%s3 + $0x178] sm:$0xf]
    %v2105 = vld [vmem:[%s3 + $0x17c] sm:$0xf]
    %v2106 = vld [vmem:[%s3 + $0x180] sm:$0xf]
    %v2107 = vld [vmem:[%s3 + $0x184] sm:$0xf]
    %v2108 = vld [vmem:[%s3 + $0x188] sm:$0xf]
    %v2109 = vld [vmem:[%s3 + $0x18c] sm:$0xf]
    %v2110 = vld [vmem:[%s3 + $0x190] sm:$0xf]
    %v2111 = vld [vmem:[%s3 + $0x194] sm:$0xf]
    %v2112 = vld [vmem:[%s3 + $0x198] sm:$0xf]
    %v2113 = vld [vmem:[%s3 + $0x19c] sm:$0xf]
    %v2114 = vld [vmem:[%s3 + $0x1a0] sm:$0xf]
    %v2115 = vld [vmem:[%s3 + $0x1a4] sm:$0xf]
    %v2116 = vld [vmem:[%s3 + $0x1a8] sm:$0xf]
    %v2117 = vld [vmem:[%s3 + $0x1ac] sm:$0xf]
    %v2118 = vld [vmem:[%s3 + $0x1b0] sm:$0xf]
    %v2119 = vld [vmem:[%s3 + $0x1b4] sm:$0xf]
    %v2120 = vld [vmem:[%s3 + $0x1b8] sm:$0xf]
    %v2121 = vld [vmem:[%s3 + $0x1bc] sm:$0xf]
    %v2122 = vld [vmem:[%s3 + $0x1c0] sm:$0xf]
    %v2123 = vld [vmem:[%s3 + $0x1c4] sm:$0xf]
    %v2124 = vld [vmem:[%s3 + $0x1c8] sm:$0xf]
    %v2125 = vld [vmem:[%s3 + $0x1cc] sm:$0xf]
    %v2126 = vld [vmem:[%s3 + $0x1d0] sm:$0xf]
    %v2127 = vld [vmem:[%s3 + $0x1d4] sm:$0xf]
    %v2128 = vld [vmem:[%s3 + $0x1d8] sm:$0xf]
    %v2129 = vld [vmem:[%s3 + $0x1dc] sm:$0xf]
    %v2130 = vld [vmem:[%s3 + $0x1e0] sm:$0xf]
    %v2131 = vld [vmem:[%s3 + $0x1e4] sm:$0xf]
    %v2132 = vld [vmem:[%s3 + $0x1e8] sm:$0xf]
    %v2133 = vld [vmem:[%s3 + $0x1ec] sm:$0xf]
    %v2134 = vld [vmem:[%s3 + $0x1f0] sm:$0xf]
    %v2135 = vld [vmem:[%s3 + $0x1f4] sm:$0xf]
    %v2136 = vld [vmem:[%s3 + $0x1f8] sm:$0xf]
    %v2137 = vld [vmem:[%s3 + $0x1fc] sm:$0xf]
    %v2138 = vld [vmem:[%s3 + $0x200] sm:$0xf]
    %v2139 = vld [vmem:[%s3 + $0x204] sm:$0xf]
    %v2140 = vld [vmem:[%s3 + $0x208] sm:$0xf]
    %v2141 = vld [vmem:[%s3 + $0x20c] sm:$0xf]
    %v2142 = vld [vmem:[%s3 + $0x210] sm:$0xf]
    %v2143 = vld [vmem:[%s3 + $0x214] sm:$0xf]
    %v2144 = vld [vmem:[%s3 + $0x218] sm:$0xf]
    %v2145 = vld [vmem:[%s3 + $0x21c] sm:$0xf]
    %v2146 = vld [vmem:[%s3 + $0x220] sm:$0xf]
    %v2147 = vld [vmem:[%s3 + $0x224] sm:$0xf]
    %v2148 = vld [vmem:[%s3 + $0x228] sm:$0xf]
    %v2149 = vld [vmem:[%s3 + $0x22c] sm:$0xf]
    %v2150 = vld [vmem:[%s3 + $0x230] sm:$0xf]
    %v2151 = vld [vmem:[%s3 + $0x234] sm:$0xf]
    %v2152 = vld [vmem:[%s3 + $0x238] sm:$0xf]
    %v2153 = vld [vmem:[%s3 + $0x23c] sm:$0xf]
    %v2154 = vld [vmem:[%s3 + $0x240] sm:$0xf]
    %v2155 = vld [vmem:[%s3 + $0x244] sm:$0xf]
    %v2156 = vld [vmem:[%s3 + $0x248] sm:$0xf]
    %v2157 = vld [vmem:[%s3 + $0x24c] sm:$0xf]
    %v2158 = vld [vmem:[%s3 + $0x250] sm:$0xf]
    %v2159 = vld [vmem:[%s3 + $0x254] sm:$0xf]
    %v2160 = vld [vmem:[%s3 + $0x258] sm:$0xf]
    %v2161 = vld [vmem:[%s3 + $0x25c] sm:$0xf]
    %v2162 = vld [vmem:[%s3 + $0x260] sm:$0xf]
    %v2163 = vld [vmem:[%s3 + $0x264] sm:$0xf]
    %v2164 = vld [vmem:[%s3 + $0x268] sm:$0xf]
    %v2165 = vld [vmem:[%s3 + $0x26c] sm:$0xf]
    %v2166 = vld [vmem:[%s3 + $0x270] sm:$0xf]
    %v2167 = vld [vmem:[%s3 + $0x274] sm:$0xf]
    %v2168 = vld [vmem:[%s3 + $0x278] sm:$0xf]
    %v2169 = vld [vmem:[%s3 + $0x27c] sm:$0xf]
    %v2170 = vld [vmem:[%s3 + $0x280] sm:$0xf]
    %v2171 = vld [vmem:[%s3 + $0x284] sm:$0xf]
    %v2172 = vld [vmem:[%s3 + $0x288] sm:$0xf]
    %v2173 = vld [vmem:[%s3 + $0x28c] sm:$0xf]
    %v2174 = vld [vmem:[%s3 + $0x290] sm:$0xf]
    %v2175 = vld [vmem:[%s3 + $0x294] sm:$0xf]
    %v2176 = vld [vmem:[%s3 + $0x298] sm:$0xf]
    %v2177 = vld [vmem:[%s3 + $0x29c] sm:$0xf]
    %v2178 = vld [vmem:[%s3 + $0x2a0] sm:$0xf]
    %v2179 = vld [vmem:[%s3 + $0x2a4] sm:$0xf]
    %v2180 = vld [vmem:[%s3 + $0x2a8] sm:$0xf]
    %v2181 = vld [vmem:[%s3 + $0x2ac] sm:$0xf]
    %v2182 = vld [vmem:[%s3 + $0x2b0] sm:$0xf]
    %v2183 = vld [vmem:[%s3 + $0x2b4] sm:$0xf]
    %v2184 = vld [vmem:[%s3 + $0x2b8] sm:$0xf]
    %v2185 = vld [vmem:[%s3 + $0x2bc] sm:$0xf]
    %v2186 = vld [vmem:[%s3 + $0x2c0] sm:$0xf]
    %v2187 = vld [vmem:[%s3 + $0x2c4] sm:$0xf]
    %v2188 = vld [vmem:[%s3 + $0x2c8] sm:$0xf]
    %v2189 = vld [vmem:[%s3 + $0x2cc] sm:$0xf]
    %v2190 = vld [vmem:[%s3 + $0x2d0] sm:$0xf]
    %v2191 = vld [vmem:[%s3 + $0x2d4] sm:$0xf]
    %v2192 = vld [vmem:[%s3 + $0x2d8] sm:$0xf]
    %v2193 = vld [vmem:[%s3 + $0x2dc] sm:$0xf]
    %v2194 = vld [vmem:[%s3 + $0x2e0] sm:$0xf]
    %v2195 = vld [vmem:[%s3 + $0x2e4] sm:$0xf]
    %v2196 = vld [vmem:[%s3 + $0x2e8] sm:$0xf]
    %v2197 = vld [vmem:[%s3 + $0x2ec] sm:$0xf]
    %v2198 = vld [vmem:[%s3 + $0x2f0] sm:$0xf]
    %v2199 = vld [vmem:[%s3 + $0x2f4] sm:$0xf]
    %v2200 = vld [vmem:[%s3 + $0x2f8] sm:$0xf]
    %v2201 = vld [vmem:[%s3 + $0x2fc] sm:$0xf]
    %v2202 = vld [vmem:[%s3 + $0x300] sm:$0xf]
    %v2203 = vld [vmem:[%s3 + $0x304] sm:$0xf]
    %v2204 = vld [vmem:[%s3 + $0x308] sm:$0xf]
    %v2205 = vld [vmem:[%s3 + $0x30c] sm:$0xf]
    %v2206 = vld [vmem:[%s3 + $0x310] sm:$0xf]
    %v2207 = vld [vmem:[%s3 + $0x314] sm:$0xf]
    %v2208 = vld [vmem:[%s3 + $0x318] sm:$0xf]
    %v2209 = vld [vmem:[%s3 + $0x31c] sm:$0xf]
    %v2210 = vld [vmem:[%s3 + $0x320] sm:$0xf]
    %v2211 = vld [vmem:[%s3 + $0x324] sm:$0xf]
    %v2212 = vld [vmem:[%s3 + $0x328] sm:$0xf]
    %v2213 = vld [vmem:[%s3 + $0x32c] sm:$0xf]
    %v2214 = vld [vmem:[%s3 + $0x330] sm:$0xf]
    %v2215 = vld [vmem:[%s3 + $0x334] sm:$0xf]
    %v2216 = vld [vmem:[%s3 + $0x338] sm:$0xf]
    %v2217 = vld [vmem:[%s3 + $0x33c] sm:$0xf]
    %v2218 = vld [vmem:[%s3 + $0x340] sm:$0xf]
    %v2219 = vld [vmem:[%s3 + $0x344] sm:$0xf]
    %v2220 = vld [vmem:[%s3 + $0x348] sm:$0xf]
    %v2221 = vld [vmem:[%s3 + $0x34c] sm:$0xf]
    %v2222 = vld [vmem:[%s3 + $0x350] sm:$0xf]
    %v2223 = vld [vmem:[%s3 + $0x354] sm:$0xf]
    %v2224 = vld [vmem:[%s3 + $0x358] sm:$0xf]
    %v2225 = vld [vmem:[%s3 + $0x35c] sm:$0xf]
    %v2226 = vld [vmem:[%s3 + $0x360] sm:$0xf]
    %v2227 = vld [vmem:[%s3 + $0x364] sm:$0xf]
    %v2228 = vld [vmem:[%s3 + $0x368] sm:$0xf]
    %v2229 = vld [vmem:[%s3 + $0x36c] sm:$0xf]
    %v2230 = vld [vmem:[%s3 + $0x370] sm:$0xf]
    %v2231 = vld [vmem:[%s3 + $0x374] sm:$0xf]
    %v2232 = vld [vmem:[%s3 + $0x378] sm:$0xf]
    %v2233 = vld [vmem:[%s3 + $0x37c] sm:$0xf]
    %v2234 = vld [vmem:[%s3 + $0x380] sm:$0xf]
    %v2235 = vld [vmem:[%s3 + $0x384] sm:$0xf]
    %v2236 = vld [vmem:[%s3 + $0x388] sm:$0xf]
    %v2237 = vld [vmem:[%s3 + $0x38c] sm:$0xf]
    %v2238 = vld [vmem:[%s3 + $0x390] sm:$0xf]
    %v2239 = vld [vmem:[%s3 + $0x394] sm:$0xf]
    %v2240 = vld [vmem:[%s3 + $0x398] sm:$0xf]
    %v2241 = vld [vmem:[%s3 + $0x39c] sm:$0xf]
    %v2242 = vld [vmem:[%s3 + $0x3a0] sm:$0xf]
    %v2243 = vld [vmem:[%s3 + $0x3a4] sm:$0xf]
    %v2244 = vld [vmem:[%s3 + $0x3a8] sm:$0xf]
    %v2245 = vld [vmem:[%s3 + $0x3ac] sm:$0xf]
    %v2246 = vld [vmem:[%s3 + $0x3b0] sm:$0xf]
    %v2247 = vld [vmem:[%s3 + $0x3b4] sm:$0xf]
    %v2248 = vld [vmem:[%s3 + $0x3b8] sm:$0xf]
    %v2249 = vld [vmem:[%s3 + $0x3bc] sm:$0xf]
    %v2250 = vld [vmem:[%s3 + $0x3c0] sm:$0xf]
    %v2251 = vld [vmem:[%s3 + $0x3c4] sm:$0xf]
    %v2252 = vld [vmem:[%s3 + $0x3c8] sm:$0xf]
    %v2253 = vld [vmem:[%s3 + $0x3cc] sm:$0xf]
    %v2254 = vld [vmem:[%s3 + $0x3d0] sm:$0xf]
    %v2255 = vld [vmem:[%s3 + $0x3d4] sm:$0xf]
    %v2256 = vld [vmem:[%s3 + $0x3d8] sm:$0xf]
    %v2257 = vld [vmem:[%s3 + $0x3dc] sm:$0xf]
    %v2258 = vld [vmem:[%s3 + $0x3e0] sm:$0xf]
    %v2259 = vld [vmem:[%s3 + $0x3e4] sm:$0xf]
    %v2260 = vld [vmem:[%s3 + $0x3e8] sm:$0xf]
    %v2261 = vld [vmem:[%s3 + $0x3ec] sm:$0xf]
    %v2262 = vld [vmem:[%s3 + $0x3f0] sm:$0xf]
    %v2263 = vld [vmem:[%s3 + $0x3f4] sm:$0xf]
    %v2264 = vld [vmem:[%s3 + $0x3f8] sm:$0xf]
    %v2265 = vld [vmem:[%s3 + $0x3fc] sm:$0xf]
    %v2266 = vld [vmem:[%s4] sm:$0x1]
    %v2268 = vlaneseq
    %v2269 = vshrl.u32 %v2268, 7
    %v2270 = vsub.s32 0, %v2269
    %v2271 = vrot.slane %v2266, %v2270
    %v2529 = vunpack.c.l.b16 %v2010
    %v2530 = vunpack.c.l.b16 %v2011
    %v2531 = vunpack.c.l.b16 %v2012
    %v2532 = vunpack.c.l.b16 %v2013
    %v2533 = vunpack.c.l.b16 %v2014
    %v2534 = vunpack.c.l.b16 %v2015
    %v2535 = vunpack.c.l.b16 %v2016
    %v2536 = vunpack.c.l.b16 %v2017
    %v2537 = vunpack.c.l.b16 %v2018
    %v2538 = vunpack.c.l.b16 %v2019
    %v2539 = vunpack.c.l.b16 %v2020
    %v2540 = vunpack.c.l.b16 %v2021
    %v2541 = vunpack.c.l.b16 %v2022
    %v2542 = vunpack.c.l.b16 %v2023
    %v2543 = vunpack.c.l.b16 %v2024
    %v2544 = vunpack.c.l.b16 %v2025
    %v2545 = vunpack.c.l.b16 %v2026
    %v2546 = vunpack.c.l.b16 %v2027
    %v2547 = vunpack.c.l.b16 %v2028
    %v2548 = vunpack.c.l.b16 %v2029
    %v2549 = vunpack.c.l.b16 %v2030
    %v2550 = vunpack.c.l.b16 %v2031
    %v2551 = vunpack.c.l.b16 %v2032
    %v2552 = vunpack.c.l.b16 %v2033
    %v2553 = vunpack.c.l.b16 %v2034
    %v2554 = vunpack.c.l.b16 %v2035
    %v2555 = vunpack.c.l.b16 %v2036
    %v2556 = vunpack.c.l.b16 %v2037
    %v2557 = vunpack.c.l.b16 %v2038
    %v2558 = vunpack.c.l.b16 %v2039
    %v2559 = vunpack.c.l.b16 %v2040
    %v2560 = vunpack.c.l.b16 %v2041
    %v2561 = vunpack.c.l.b16 %v2042
    %v2562 = vunpack.c.l.b16 %v2043
    %v2563 = vunpack.c.l.b16 %v2044
    %v2564 = vunpack.c.l.b16 %v2045
    %v2565 = vunpack.c.l.b16 %v2046
    %v2566 = vunpack.c.l.b16 %v2047
    %v2567 = vunpack.c.l.b16 %v2048
    %v2568 = vunpack.c.l.b16 %v2049
    %v2569 = vunpack.c.l.b16 %v2050
    %v2570 = vunpack.c.l.b16 %v2051
    %v2571 = vunpack.c.l.b16 %v2052
    %v2572 = vunpack.c.l.b16 %v2053
    %v2573 = vunpack.c.l.b16 %v2054
    %v2574 = vunpack.c.l.b16 %v2055
    %v2575 = vunpack.c.l.b16 %v2056
    %v2576 = vunpack.c.l.b16 %v2057
    %v2577 = vunpack.c.l.b16 %v2058
    %v2578 = vunpack.c.l.b16 %v2059
    %v2579 = vunpack.c.l.b16 %v2060
    %v2580 = vunpack.c.l.b16 %v2061
    %v2581 = vunpack.c.l.b16 %v2062
    %v2582 = vunpack.c.l.b16 %v2063
    %v2583 = vunpack.c.l.b16 %v2064
    %v2584 = vunpack.c.l.b16 %v2065
    %v2585 = vunpack.c.l.b16 %v2066
    %v2586 = vunpack.c.l.b16 %v2067
    %v2587 = vunpack.c.l.b16 %v2068
    %v2588 = vunpack.c.l.b16 %v2069
    %v2589 = vunpack.c.l.b16 %v2070
    %v2590 = vunpack.c.l.b16 %v2071
    %v2591 = vunpack.c.l.b16 %v2072
    %v2592 = vunpack.c.l.b16 %v2073
    %v2593 = vunpack.c.l.b16 %v2074
    %v2594 = vunpack.c.l.b16 %v2075
    %v2595 = vunpack.c.l.b16 %v2076
    %v2596 = vunpack.c.l.b16 %v2077
    %v2597 = vunpack.c.l.b16 %v2078
    %v2598 = vunpack.c.l.b16 %v2079
    %v2599 = vunpack.c.l.b16 %v2080
    %v2600 = vunpack.c.l.b16 %v2081
    %v2601 = vunpack.c.l.b16 %v2082
    %v2602 = vunpack.c.l.b16 %v2083
    %v2603 = vunpack.c.l.b16 %v2084
    %v2604 = vunpack.c.l.b16 %v2085
    %v2605 = vunpack.c.l.b16 %v2086
    %v2606 = vunpack.c.l.b16 %v2087
    %v2607 = vunpack.c.l.b16 %v2088
    %v2608 = vunpack.c.l.b16 %v2089
    %v2609 = vunpack.c.l.b16 %v2090
    %v2610 = vunpack.c.l.b16 %v2091
    %v2611 = vunpack.c.l.b16 %v2092
    %v2612 = vunpack.c.l.b16 %v2093
    %v2613 = vunpack.c.l.b16 %v2094
    %v2614 = vunpack.c.l.b16 %v2095
    %v2615 = vunpack.c.l.b16 %v2096
    %v2616 = vunpack.c.l.b16 %v2097
    %v2617 = vunpack.c.l.b16 %v2098
    %v2618 = vunpack.c.l.b16 %v2099
    %v2619 = vunpack.c.l.b16 %v2100
    %v2620 = vunpack.c.l.b16 %v2101
    %v2621 = vunpack.c.l.b16 %v2102
    %v2622 = vunpack.c.l.b16 %v2103
    %v2623 = vunpack.c.l.b16 %v2104
    %v2624 = vunpack.c.l.b16 %v2105
    %v2625 = vunpack.c.l.b16 %v2106
    %v2626 = vunpack.c.l.b16 %v2107
    %v2627 = vunpack.c.l.b16 %v2108
    %v2628 = vunpack.c.l.b16 %v2109
    %v2629 = vunpack.c.l.b16 %v2110
    %v2630 = vunpack.c.l.b16 %v2111
    %v2631 = vunpack.c.l.b16 %v2112
    %v2632 = vunpack.c.l.b16 %v2113
    %v2633 = vunpack.c.l.b16 %v2114
    %v2634 = vunpack.c.l.b16 %v2115
    %v2635 = vunpack.c.l.b16 %v2116
    %v2636 = vunpack.c.l.b16 %v2117
    %v2637 = vunpack.c.l.b16 %v2118
    %v2638 = vunpack.c.l.b16 %v2119
    %v2639 = vunpack.c.l.b16 %v2120
    %v2640 = vunpack.c.l.b16 %v2121
    %v2641 = vunpack.c.l.b16 %v2122
    %v2642 = vunpack.c.l.b16 %v2123
    %v2643 = vunpack.c.l.b16 %v2124
    %v2644 = vunpack.c.l.b16 %v2125
    %v2645 = vunpack.c.l.b16 %v2126
    %v2646 = vunpack.c.l.b16 %v2127
    %v2647 = vunpack.c.l.b16 %v2128
    %v2648 = vunpack.c.l.b16 %v2129
    %v2649 = vunpack.c.l.b16 %v2130
    %v2650 = vunpack.c.l.b16 %v2131
    %v2651 = vunpack.c.l.b16 %v2132
    %v2652 = vunpack.c.l.b16 %v2133
    %v2653 = vunpack.c.l.b16 %v2134
    %v2654 = vunpack.c.l.b16 %v2135
    %v2655 = vunpack.c.l.b16 %v2136
    %v2656 = vunpack.c.l.b16 %v2137
    %v2657 = vunpack.c.l.b16 %v2138
    %v2658 = vunpack.c.l.b16 %v2139
    %v2659 = vunpack.c.l.b16 %v2140
    %v2660 = vunpack.c.l.b16 %v2141
    %v2661 = vunpack.c.l.b16 %v2142
    %v2662 = vunpack.c.l.b16 %v2143
    %v2663 = vunpack.c.l.b16 %v2144
    %v2664 = vunpack.c.l.b16 %v2145
    %v2665 = vunpack.c.l.b16 %v2146
    %v2666 = vunpack.c.l.b16 %v2147
    %v2667 = vunpack.c.l.b16 %v2148
    %v2668 = vunpack.c.l.b16 %v2149
    %v2669 = vunpack.c.l.b16 %v2150
    %v2670 = vunpack.c.l.b16 %v2151
    %v2671 = vunpack.c.l.b16 %v2152
    %v2672 = vunpack.c.l.b16 %v2153
    %v2673 = vunpack.c.l.b16 %v2154
    %v2674 = vunpack.c.l.b16 %v2155
    %v2675 = vunpack.c.l.b16 %v2156
    %v2676 = vunpack.c.l.b16 %v2157
    %v2677 = vunpack.c.l.b16 %v2158
    %v2678 = vunpack.c.l.b16 %v2159
    %v2679 = vunpack.c.l.b16 %v2160
    %v2680 = vunpack.c.l.b16 %v2161
    %v2681 = vunpack.c.l.b16 %v2162
    %v2682 = vunpack.c.l.b16 %v2163
    %v2683 = vunpack.c.l.b16 %v2164
    %v2684 = vunpack.c.l.b16 %v2165
    %v2685 = vunpack.c.l.b16 %v2166
    %v2686 = vunpack.c.l.b16 %v2167
    %v2687 = vunpack.c.l.b16 %v2168
    %v2688 = vunpack.c.l.b16 %v2169
    %v2689 = vunpack.c.l.b16 %v2170
    %v2690 = vunpack.c.l.b16 %v2171
    %v2691 = vunpack.c.l.b16 %v2172
    %v2692 = vunpack.c.l.b16 %v2173
    %v2693 = vunpack.c.l.b16 %v2174
    %v2694 = vunpack.c.l.b16 %v2175
    %v2695 = vunpack.c.l.b16 %v2176
    %v2696 = vunpack.c.l.b16 %v2177
    %v2697 = vunpack.c.l.b16 %v2178
    %v2698 = vunpack.c.l.b16 %v2179
    %v2699 = vunpack.c.l.b16 %v2180
    %v2700 = vunpack.c.l.b16 %v2181
    %v2701 = vunpack.c.l.b16 %v2182
    %v2702 = vunpack.c.l.b16 %v2183
    %v2703 = vunpack.c.l.b16 %v2184
    %v2704 = vunpack.c.l.b16 %v2185
    %v2705 = vunpack.c.l.b16 %v2186
    %v2706 = vunpack.c.l.b16 %v2187
    %v2707 = vunpack.c.l.b16 %v2188
    %v2708 = vunpack.c.l.b16 %v2189
    %v2709 = vunpack.c.l.b16 %v2190
    %v2710 = vunpack.c.l.b16 %v2191
    %v2711 = vunpack.c.l.b16 %v2192
    %v2712 = vunpack.c.l.b16 %v2193
    %v2713 = vunpack.c.l.b16 %v2194
    %v2714 = vunpack.c.l.b16 %v2195
    %v2715 = vunpack.c.l.b16 %v2196
    %v2716 = vunpack.c.l.b16 %v2197
    %v2717 = vunpack.c.l.b16 %v2198
    %v2718 = vunpack.c.l.b16 %v2199
    %v2719 = vunpack.c.l.b16 %v2200
    %v2720 = vunpack.c.l.b16 %v2201
    %v2721 = vunpack.c.l.b16 %v2202
    %v2722 = vunpack.c.l.b16 %v2203
    %v2723 = vunpack.c.l.b16 %v2204
    %v2724 = vunpack.c.l.b16 %v2205
    %v2725 = vunpack.c.l.b16 %v2206
    %v2726 = vunpack.c.l.b16 %v2207
    %v2727 = vunpack.c.l.b16 %v2208
    %v2728 = vunpack.c.l.b16 %v2209
    %v2729 = vunpack.c.l.b16 %v2210
    %v2730 = vunpack.c.l.b16 %v2211
    %v2731 = vunpack.c.l.b16 %v2212
    %v2732 = vunpack.c.l.b16 %v2213
    %v2733 = vunpack.c.l.b16 %v2214
    %v2734 = vunpack.c.l.b16 %v2215
    %v2735 = vunpack.c.l.b16 %v2216
    %v2736 = vunpack.c.l.b16 %v2217
    %v2737 = vunpack.c.l.b16 %v2218
    %v2738 = vunpack.c.l.b16 %v2219
    %v2739 = vunpack.c.l.b16 %v2220
    %v2740 = vunpack.c.l.b16 %v2221
    %v2741 = vunpack.c.l.b16 %v2222
    %v2742 = vunpack.c.l.b16 %v2223
    %v2743 = vunpack.c.l.b16 %v2224
    %v2744 = vunpack.c.l.b16 %v2225
    %v2745 = vunpack.c.l.b16 %v2226
    %v2746 = vunpack.c.l.b16 %v2227
    %v2747 = vunpack.c.l.b16 %v2228
    %v2748 = vunpack.c.l.b16 %v2229
    %v2749 = vunpack.c.l.b16 %v2230
    %v2750 = vunpack.c.l.b16 %v2231
    %v2751 = vunpack.c.l.b16 %v2232
    %v2752 = vunpack.c.l.b16 %v2233
    %v2753 = vunpack.c.l.b16 %v2234
    %v2754 = vunpack.c.l.b16 %v2235
    %v2755 = vunpack.c.l.b16 %v2236
    %v2756 = vunpack.c.l.b16 %v2237
    %v2757 = vunpack.c.l.b16 %v2238
    %v2758 = vunpack.c.l.b16 %v2239
    %v2759 = vunpack.c.l.b16 %v2240
    %v2760 = vunpack.c.l.b16 %v2241
    %v2761 = vunpack.c.l.b16 %v2242
    %v2762 = vunpack.c.l.b16 %v2243
    %v2763 = vunpack.c.l.b16 %v2244
    %v2764 = vunpack.c.l.b16 %v2245
    %v2765 = vunpack.c.l.b16 %v2246
    %v2766 = vunpack.c.l.b16 %v2247
    %v2767 = vunpack.c.l.b16 %v2248
    %v2768 = vunpack.c.l.b16 %v2249
    %v2769 = vunpack.c.l.b16 %v2250
    %v2770 = vunpack.c.l.b16 %v2251
    %v2771 = vunpack.c.l.b16 %v2252
    %v2772 = vunpack.c.l.b16 %v2253
    %v2773 = vunpack.c.l.b16 %v2254
    %v2774 = vunpack.c.l.b16 %v2255
    %v2775 = vunpack.c.l.b16 %v2256
    %v2776 = vunpack.c.l.b16 %v2257
    %v2777 = vunpack.c.l.b16 %v2258
    %v2778 = vunpack.c.l.b16 %v2259
    %v2779 = vunpack.c.l.b16 %v2260
    %v2780 = vunpack.c.l.b16 %v2261
    %v2781 = vunpack.c.l.b16 %v2262
    %v2782 = vunpack.c.l.b16 %v2263
    %v2783 = vunpack.c.l.b16 %v2264
    %v2784 = vunpack.c.l.b16 %v2265
    %v2785 = vpack.c.b16 %v2530, %v2529
    %v2786 = vpack.c.b16 %v2532, %v2531
    %v2787 = vpack.c.b16 %v2534, %v2533
    %v2788 = vpack.c.b16 %v2536, %v2535
    %v2789 = vpack.c.b16 %v2538, %v2537
    %v2790 = vpack.c.b16 %v2540, %v2539
    %v2791 = vpack.c.b16 %v2542, %v2541
    %v2792 = vpack.c.b16 %v2544, %v2543
    %v2793 = vpack.c.b16 %v2546, %v2545
    %v2794 = vpack.c.b16 %v2548, %v2547
    %v2795 = vpack.c.b16 %v2550, %v2549
    %v2796 = vpack.c.b16 %v2552, %v2551
    %v2797 = vpack.c.b16 %v2554, %v2553
    %v2798 = vpack.c.b16 %v2556, %v2555
    %v2799 = vpack.c.b16 %v2558, %v2557
    %v2800 = vpack.c.b16 %v2560, %v2559
    %v2801 = vpack.c.b16 %v2562, %v2561
    %v2802 = vpack.c.b16 %v2564, %v2563
    %v2803 = vpack.c.b16 %v2566, %v2565
    %v2804 = vpack.c.b16 %v2568, %v2567
    %v2805 = vpack.c.b16 %v2570, %v2569
    %v2806 = vpack.c.b16 %v2572, %v2571
    %v2807 = vpack.c.b16 %v2574, %v2573
    %v2808 = vpack.c.b16 %v2576, %v2575
    %v2809 = vpack.c.b16 %v2578, %v2577
    %v2810 = vpack.c.b16 %v2580, %v2579
    %v2811 = vpack.c.b16 %v2582, %v2581
    %v2812 = vpack.c.b16 %v2584, %v2583
    %v2813 = vpack.c.b16 %v2586, %v2585
    %v2814 = vpack.c.b16 %v2588, %v2587
    %v2815 = vpack.c.b16 %v2590, %v2589
    %v2816 = vpack.c.b16 %v2592, %v2591
    %v2817 = vpack.c.b16 %v2594, %v2593
    %v2818 = vpack.c.b16 %v2596, %v2595
    %v2819 = vpack.c.b16 %v2598, %v2597
    %v2820 = vpack.c.b16 %v2600, %v2599
    %v2821 = vpack.c.b16 %v2602, %v2601
    %v2822 = vpack.c.b16 %v2604, %v2603
    %v2823 = vpack.c.b16 %v2606, %v2605
    %v2824 = vpack.c.b16 %v2608, %v2607
    %v2825 = vpack.c.b16 %v2610, %v2609
    %v2826 = vpack.c.b16 %v2612, %v2611
    %v2827 = vpack.c.b16 %v2614, %v2613
    %v2828 = vpack.c.b16 %v2616, %v2615
    %v2829 = vpack.c.b16 %v2618, %v2617
    %v2830 = vpack.c.b16 %v2620, %v2619
    %v2831 = vpack.c.b16 %v2622, %v2621
    %v2832 = vpack.c.b16 %v2624, %v2623
    %v2833 = vpack.c.b16 %v2626, %v2625
    %v2834 = vpack.c.b16 %v2628, %v2627
    %v2835 = vpack.c.b16 %v2630, %v2629
    %v2836 = vpack.c.b16 %v2632, %v2631
    %v2837 = vpack.c.b16 %v2634, %v2633
    %v2838 = vpack.c.b16 %v2636, %v2635
    %v2839 = vpack.c.b16 %v2638, %v2637
    %v2840 = vpack.c.b16 %v2640, %v2639
    %v2841 = vpack.c.b16 %v2642, %v2641
    %v2842 = vpack.c.b16 %v2644, %v2643
    %v2843 = vpack.c.b16 %v2646, %v2645
    %v2844 = vpack.c.b16 %v2648, %v2647
    %v2845 = vpack.c.b16 %v2650, %v2649
    %v2846 = vpack.c.b16 %v2652, %v2651
    %v2847 = vpack.c.b16 %v2654, %v2653
    %v2848 = vpack.c.b16 %v2656, %v2655
    %v2849 = vpack.c.b16 %v2658, %v2657
    %v2850 = vpack.c.b16 %v2660, %v2659
    %v2851 = vpack.c.b16 %v2662, %v2661
    %v2852 = vpack.c.b16 %v2664, %v2663
    %v2853 = vpack.c.b16 %v2666, %v2665
    %v2854 = vpack.c.b16 %v2668, %v2667
    %v2855 = vpack.c.b16 %v2670, %v2669
    %v2856 = vpack.c.b16 %v2672, %v2671
    %v2857 = vpack.c.b16 %v2674, %v2673
    %v2858 = vpack.c.b16 %v2676, %v2675
    %v2859 = vpack.c.b16 %v2678, %v2677
    %v2860 = vpack.c.b16 %v2680, %v2679
    %v2861 = vpack.c.b16 %v2682, %v2681
    %v2862 = vpack.c.b16 %v2684, %v2683
    %v2863 = vpack.c.b16 %v2686, %v2685
    %v2864 = vpack.c.b16 %v2688, %v2687
    %v2865 = vpack.c.b16 %v2690, %v2689
    %v2866 = vpack.c.b16 %v2692, %v2691
    %v2867 = vpack.c.b16 %v2694, %v2693
    %v2868 = vpack.c.b16 %v2696, %v2695
    %v2869 = vpack.c.b16 %v2698, %v2697
    %v2870 = vpack.c.b16 %v2700, %v2699
    %v2871 = vpack.c.b16 %v2702, %v2701
    %v2872 = vpack.c.b16 %v2704, %v2703
    %v2873 = vpack.c.b16 %v2706, %v2705
    %v2874 = vpack.c.b16 %v2708, %v2707
    %v2875 = vpack.c.b16 %v2710, %v2709
    %v2876 = vpack.c.b16 %v2712, %v2711
    %v2877 = vpack.c.b16 %v2714, %v2713
    %v2878 = vpack.c.b16 %v2716, %v2715
    %v2879 = vpack.c.b16 %v2718, %v2717
    %v2880 = vpack.c.b16 %v2720, %v2719
    %v2881 = vpack.c.b16 %v2722, %v2721
    %v2882 = vpack.c.b16 %v2724, %v2723
    %v2883 = vpack.c.b16 %v2726, %v2725
    %v2884 = vpack.c.b16 %v2728, %v2727
    %v2885 = vpack.c.b16 %v2730, %v2729
    %v2886 = vpack.c.b16 %v2732, %v2731
    %v2887 = vpack.c.b16 %v2734, %v2733
    %v2888 = vpack.c.b16 %v2736, %v2735
    %v2889 = vpack.c.b16 %v2738, %v2737
    %v2890 = vpack.c.b16 %v2740, %v2739
    %v2891 = vpack.c.b16 %v2742, %v2741
    %v2892 = vpack.c.b16 %v2744, %v2743
    %v2893 = vpack.c.b16 %v2746, %v2745
    %v2894 = vpack.c.b16 %v2748, %v2747
    %v2895 = vpack.c.b16 %v2750, %v2749
    %v2896 = vpack.c.b16 %v2752, %v2751
    %v2897 = vpack.c.b16 %v2754, %v2753
    %v2898 = vpack.c.b16 %v2756, %v2755
    %v2899 = vpack.c.b16 %v2758, %v2757
    %v2900 = vpack.c.b16 %v2760, %v2759
    %v2901 = vpack.c.b16 %v2762, %v2761
    %v2902 = vpack.c.b16 %v2764, %v2763
    %v2903 = vpack.c.b16 %v2766, %v2765
    %v2904 = vpack.c.b16 %v2768, %v2767
    %v2905 = vpack.c.b16 %v2770, %v2769
    %v2906 = vpack.c.b16 %v2772, %v2771
    %v2907 = vpack.c.b16 %v2774, %v2773
    %v2908 = vpack.c.b16 %v2776, %v2775
    %v2909 = vpack.c.b16 %v2778, %v2777
    %v2910 = vpack.c.b16 %v2780, %v2779
    %v2911 = vpack.c.b16 %v2782, %v2781
    %v2912 = vpack.c.b16 %v2784, %v2783
    %3041 = vmatprep.subr.bf16.mxu0 0
    %3042 = vmatpush1.bf16.msra.mxu0 %v2785
    %3043 = vmatprep.subr.bf16.mxu0 0
    %3044 = vmatpush1.bf16.msra.mxu0 %v2786
    %3045 = vmatprep.subr.bf16.mxu0 0
    %3046 = vmatpush1.bf16.msra.mxu0 %v2787
    %3047 = vmatprep.subr.bf16.mxu0 0
    %3048 = vmatpush1.bf16.msra.mxu0 %v2788
    %3049 = vmatprep.subr.bf16.mxu0 0
    %3050 = vmatpush1.bf16.msra.mxu0 %v2789
    %3051 = vmatprep.subr.bf16.mxu0 0
    %3052 = vmatpush1.bf16.msra.mxu0 %v2790
    %3053 = vmatprep.subr.bf16.mxu0 0
    %3054 = vmatpush1.bf16.msra.mxu0 %v2791
    %3055 = vmatprep.subr.bf16.mxu0 0
    %3056 = vmatpush1.bf16.msra.mxu0 %v2792
    %3057 = vmatprep.subr.bf16.mxu0 0
    %3058 = vmatpush1.bf16.msra.mxu0 %v2793
    %3059 = vmatprep.subr.bf16.mxu0 0
    %3060 = vmatpush1.bf16.msra.mxu0 %v2794
    %3061 = vmatprep.subr.bf16.mxu0 0
    %3062 = vmatpush1.bf16.msra.mxu0 %v2795
    %3063 = vmatprep.subr.bf16.mxu0 0
    %3064 = vmatpush1.bf16.msra.mxu0 %v2796
    %3065 = vmatprep.subr.bf16.mxu0 0
    %3066 = vmatpush1.bf16.msra.mxu0 %v2797
    %3067 = vmatprep.subr.bf16.mxu0 0
    %3068 = vmatpush1.bf16.msra.mxu0 %v2798
    %3069 = vmatprep.subr.bf16.mxu0 0
    %3070 = vmatpush1.bf16.msra.mxu0 %v2799
    %3071 = vmatprep.subr.bf16.mxu0 0
    %3072 = vmatpush1.bf16.msra.mxu0 %v2800
    %3073 = vmatprep.mubr.bf16.mxu0 %v1995
    %3074 = vmatmul.mubr.bf16.gmra.mrb[0].mxu0 %v1994
    %v3075 = vpop.f32.mrb[0].mxu0
    %v3076 = vadd.f32 %v2271, %v3075
    %v3077 = vpop.f32.mrb[0].mxu0
    %v3078 = vpop.f32.mrb[0].mxu0
    %v3079 = vpop.f32.mrb[0].mxu0
    %3080 = vdwg.mxu0
    %3081 = vmatprep.subr.bf16.mxu0 0
    %3082 = vmatpush1.bf16.msra.mxu0 %v2801
    %3083 = vmatprep.subr.bf16.mxu0 0
    %3084 = vmatpush1.bf16.msra.mxu0 %v2802
    %3085 = vmatprep.subr.bf16.mxu0 0
    %3086 = vmatpush1.bf16.msra.mxu0 %v2803
    %3087 = vmatprep.subr.bf16.mxu0 0
    %3088 = vmatpush1.bf16.msra.mxu0 %v2804
    %3089 = vmatprep.subr.bf16.mxu0 0
    %3090 = vmatpush1.bf16.msra.mxu0 %v2805
    %3091 = vmatprep.subr.bf16.mxu0 0
    %3092 = vmatpush1.bf16.msra.mxu0 %v2806
    %3093 = vmatprep.subr.bf16.mxu0 0
    %3094 = vmatpush1.bf16.msra.mxu0 %v2807
    %3095 = vmatprep.subr.bf16.mxu0 0
    %3096 = vmatpush1.bf16.msra.mxu0 %v2808
    %3097 = vmatprep.subr.bf16.mxu0 0
    %3098 = vmatpush1.bf16.msra.mxu0 %v2809
    %3099 = vmatprep.subr.bf16.mxu0 0
    %3100 = vmatpush1.bf16.msra.mxu0 %v2810
    %3101 = vmatprep.subr.bf16.mxu0 0
    %3102 = vmatpush1.bf16.msra.mxu0 %v2811
    %3103 = vmatprep.subr.bf16.mxu0 0
    %3104 = vmatpush1.bf16.msra.mxu0 %v2812
    %3105 = vmatprep.subr.bf16.mxu0 0
    %3106 = vmatpush1.bf16.msra.mxu0 %v2813
    %3107 = vmatprep.subr.bf16.mxu0 0
    %3108 = vmatpush1.bf16.msra.mxu0 %v2814
    %3109 = vmatprep.subr.bf16.mxu0 0
    %3110 = vmatpush1.bf16.msra.mxu0 %v2815
    %3111 = vmatprep.subr.bf16.mxu0 0
    %3112 = vmatpush1.bf16.msra.mxu0 %v2816
    %3113 = vmatprep.mubr.bf16.mxu0 %v1997
    %3114 = vmatmul.mubr.bf16.gmra.mrb[0].mxu0 %v1996
    %v3115 = vpop.f32.mrb[0].mxu0
    %v3116 = vadd.f32 %v3076, %v3115
    %v3117 = vpop.f32.mrb[0].mxu0
    %v3118 = vpop.f32.mrb[0].mxu0
    %v3119 = vpop.f32.mrb[0].mxu0
    %3120 = vdwg.mxu0
    %3121 = vmatprep.subr.bf16.mxu0 0
    %3122 = vmatpush1.bf16.msra.mxu0 %v2817
    %3123 = vmatprep.subr.bf16.mxu0 0
    %3124 = vmatpush1.bf16.msra.mxu0 %v2818
    %3125 = vmatprep.subr.bf16.mxu0 0
    %3126 = vmatpush1.bf16.msra.mxu0 %v2819
    %3127 = vmatprep.subr.bf16.mxu0 0
    %3128 = vmatpush1.bf16.msra.mxu0 %v2820
    %3129 = vmatprep.subr.bf16.mxu0 0
    %3130 = vmatpush1.bf16.msra.mxu0 %v2821
    %3131 = vmatprep.subr.bf16.mxu0 0
    %3132 = vmatpush1.bf16.msra.mxu0 %v2822
    %3133 = vmatprep.subr.bf16.mxu0 0
    %3134 = vmatpush1.bf16.msra.mxu0 %v2823
    %3135 = vmatprep.subr.bf16.mxu0 0
    %3136 = vmatpush1.bf16.msra.mxu0 %v2824
    %3137 = vmatprep.subr.bf16.mxu0 0
    %3138 = vmatpush1.bf16.msra.mxu0 %v2825
    %3139 = vmatprep.subr.bf16.mxu0 0
    %3140 = vmatpush1.bf16.msra.mxu0 %v2826
    %3141 = vmatprep.subr.bf16.mxu0 0
    %3142 = vmatpush1.bf16.msra.mxu0 %v2827
    %3143 = vmatprep.subr.bf16.mxu0 0
    %3144 = vmatpush1.bf16.msra.mxu0 %v2828
    %3145 = vmatprep.subr.bf16.mxu0 0
    %3146 = vmatpush1.bf16.msra.mxu0 %v2829
    %3147 = vmatprep.subr.bf16.mxu0 0
    %3148 = vmatpush1.bf16.msra.mxu0 %v2830
    %3149 = vmatprep.subr.bf16.mxu0 0
    %3150 = vmatpush1.bf16.msra.mxu0 %v2831
    %3151 = vmatprep.subr.bf16.mxu0 0
    %3152 = vmatpush1.bf16.msra.mxu0 %v2832
    %3153 = vmatprep.mubr.bf16.mxu0 %v1999
    %3154 = vmatmul.mubr.bf16.gmra.mrb[0].mxu0 %v1998
    %v3155 = vpop.f32.mrb[0].mxu0
    %v3156 = vadd.f32 %v3116, %v3155
    %v3157 = vpop.f32.mrb[0].mxu0
    %v3158 = vpop.f32.mrb[0].mxu0
    %v3159 = vpop.f32.mrb[0].mxu0
    %3160 = vdwg.mxu0
    %3161 = vmatprep.subr.bf16.mxu0 0
    %3162 = vmatpush1.bf16.msra.mxu0 %v2833
    %3163 = vmatprep.subr.bf16.mxu0 0
    %3164 = vmatpush1.bf16.msra.mxu0 %v2834
    %3165 = vmatprep.subr.bf16.mxu0 0
    %3166 = vmatpush1.bf16.msra.mxu0 %v2835
    %3167 = vmatprep.subr.bf16.mxu0 0
    %3168 = vmatpush1.bf16.msra.mxu0 %v2836
    %3169 = vmatprep.subr.bf16.mxu0 0
    %3170 = vmatpush1.bf16.msra.mxu0 %v2837
    %3171 = vmatprep.subr.bf16.mxu0 0
    %3172 = vmatpush1.bf16.msra.mxu0 %v2838
    %3173 = vmatprep.subr.bf16.mxu0 0
    %3174 = vmatpush1.bf16.msra.mxu0 %v2839
    %3175 = vmatprep.subr.bf16.mxu0 0
    %3176 = vmatpush1.bf16.msra.mxu0 %v2840
    %3177 = vmatprep.subr.bf16.mxu0 0
    %3178 = vmatpush1.bf16.msra.mxu0 %v2841
    %3179 = vmatprep.subr.bf16.mxu0 0
    %3180 = vmatpush1.bf16.msra.mxu0 %v2842
    %3181 = vmatprep.subr.bf16.mxu0 0
    %3182 = vmatpush1.bf16.msra.mxu0 %v2843
    %3183 = vmatprep.subr.bf16.mxu0 0
    %3184 = vmatpush1.bf16.msra.mxu0 %v2844
    %3185 = vmatprep.subr.bf16.mxu0 0
    %3186 = vmatpush1.bf16.msra.mxu0 %v2845
    %3187 = vmatprep.subr.bf16.mxu0 0
    %3188 = vmatpush1.bf16.msra.mxu0 %v2846
    %3189 = vmatprep.subr.bf16.mxu0 0
    %3190 = vmatpush1.bf16.msra.mxu0 %v2847
    %3191 = vmatprep.subr.bf16.mxu0 0
    %3192 = vmatpush1.bf16.msra.mxu0 %v2848
    %3193 = vmatprep.mubr.bf16.mxu0 %v2001
    %3194 = vmatmul.mubr.bf16.gmra.mrb[0].mxu0 %v2000
    %v3195 = vpop.f32.mrb[0].mxu0
    %v3196 = vadd.f32 %v3156, %v3195
    %v3197 = vpop.f32.mrb[0].mxu0
    %v3198 = vpop.f32.mrb[0].mxu0
    %v3199 = vpop.f32.mrb[0].mxu0
    %3200 = vdwg.mxu0
    %3201 = vmatprep.subr.bf16.mxu0 0
    %3202 = vmatpush1.bf16.msra.mxu0 %v2849
    %3203 = vmatprep.subr.bf16.mxu0 0
    %3204 = vmatpush1.bf16.msra.mxu0 %v2850
    %3205 = vmatprep.subr.bf16.mxu0 0
    %3206 = vmatpush1.bf16.msra.mxu0 %v2851
    %3207 = vmatprep.subr.bf16.mxu0 0
    %3208 = vmatpush1.bf16.msra.mxu0 %v2852
    %3209 = vmatprep.subr.bf16.mxu0 0
    %3210 = vmatpush1.bf16.msra.mxu0 %v2853
    %3211 = vmatprep.subr.bf16.mxu0 0
    %3212 = vmatpush1.bf16.msra.mxu0 %v2854
    %3213 = vmatprep.subr.bf16.mxu0 0
    %3214 = vmatpush1.bf16.msra.mxu0 %v2855
    %3215 = vmatprep.subr.bf16.mxu0 0
    %3216 = vmatpush1.bf16.msra.mxu0 %v2856
    %3217 = vmatprep.subr.bf16.mxu0 0
    %3218 = vmatpush1.bf16.msra.mxu0 %v2857
    %3219 = vmatprep.subr.bf16.mxu0 0
    %3220 = vmatpush1.bf16.msra.mxu0 %v2858
    %3221 = vmatprep.subr.bf16.mxu0 0
    %3222 = vmatpush1.bf16.msra.mxu0 %v2859
    %3223 = vmatprep.subr.bf16.mxu0 0
    %3224 = vmatpush1.bf16.msra.mxu0 %v2860
    %3225 = vmatprep.subr.bf16.mxu0 0
    %3226 = vmatpush1.bf16.msra.mxu0 %v2861
    %3227 = vmatprep.subr.bf16.mxu0 0
    %3228 = vmatpush1.bf16.msra.mxu0 %v2862
    %3229 = vmatprep.subr.bf16.mxu0 0
    %3230 = vmatpush1.bf16.msra.mxu0 %v2863
    %3231 = vmatprep.subr.bf16.mxu0 0
    %3232 = vmatpush1.bf16.msra.mxu0 %v2864
    %3233 = vmatprep.mubr.bf16.mxu0 %v2003
    %3234 = vmatmul.mubr.bf16.gmra.mrb[0].mxu0 %v2002
    %v3235 = vpop.f32.mrb[0].mxu0
    %v3236 = vadd.f32 %v3196, %v3235
    %v3237 = vpop.f32.mrb[0].mxu0
    %v3238 = vpop.f32.mrb[0].mxu0
    %v3239 = vpop.f32.mrb[0].mxu0
    %3240 = vdwg.mxu0
    %3241 = vmatprep.subr.bf16.mxu0 0
    %3242 = vmatpush1.bf16.msra.mxu0 %v2865
    %3243 = vmatprep.subr.bf16.mxu0 0
    %3244 = vmatpush1.bf16.msra.mxu0 %v2866
    %3245 = vmatprep.subr.bf16.mxu0 0
    %3246 = vmatpush1.bf16.msra.mxu0 %v2867
    %3247 = vmatprep.subr.bf16.mxu0 0
    %3248 = vmatpush1.bf16.msra.mxu0 %v2868
    %3249 = vmatprep.subr.bf16.mxu0 0
    %3250 = vmatpush1.bf16.msra.mxu0 %v2869
    %3251 = vmatprep.subr.bf16.mxu0 0
    %3252 = vmatpush1.bf16.msra.mxu0 %v2870
    %3253 = vmatprep.subr.bf16.mxu0 0
    %3254 = vmatpush1.bf16.msra.mxu0 %v2871
    %3255 = vmatprep.subr.bf16.mxu0 0
    %3256 = vmatpush1.bf16.msra.mxu0 %v2872
    %3257 = vmatprep.subr.bf16.mxu0 0
    %3258 = vmatpush1.bf16.msra.mxu0 %v2873
    %3259 = vmatprep.subr.bf16.mxu0 0
    %3260 = vmatpush1.bf16.msra.mxu0 %v2874
    %3261 = vmatprep.subr.bf16.mxu0 0
    %3262 = vmatpush1.bf16.msra.mxu0 %v2875
    %3263 = vmatprep.subr.bf16.mxu0 0
    %3264 = vmatpush1.bf16.msra.mxu0 %v2876
    %3265 = vmatprep.subr.bf16.mxu0 0
    %3266 = vmatpush1.bf16.msra.mxu0 %v2877
    %3267 = vmatprep.subr.bf16.mxu0 0
    %3268 = vmatpush1.bf16.msra.mxu0 %v2878
    %3269 = vmatprep.subr.bf16.mxu0 0
    %3270 = vmatpush1.bf16.msra.mxu0 %v2879
    %3271 = vmatprep.subr.bf16.mxu0 0
    %3272 = vmatpush1.bf16.msra.mxu0 %v2880
    %3273 = vmatprep.mubr.bf16.mxu0 %v2005
    %3274 = vmatmul.mubr.bf16.gmra.mrb[0].mxu0 %v2004
    %v3275 = vpop.f32.mrb[0].mxu0
    %v3276 = vadd.f32 %v3236, %v3275
    %v3277 = vpop.f32.mrb[0].mxu0
    %v3278 = vpop.f32.mrb[0].mxu0
    %v3279 = vpop.f32.mrb[0].mxu0
    %3280 = vdwg.mxu0
    %3281 = vmatprep.subr.bf16.mxu0 0
    %3282 = vmatpush1.bf16.msra.mxu0 %v2881
    %3283 = vmatprep.subr.bf16.mxu0 0
    %3284 = vmatpush1.bf16.msra.mxu0 %v2882
    %3285 = vmatprep.subr.bf16.mxu0 0
    %3286 = vmatpush1.bf16.msra.mxu0 %v2883
    %3287 = vmatprep.subr.bf16.mxu0 0
    %3288 = vmatpush1.bf16.msra.mxu0 %v2884
    %3289 = vmatprep.subr.bf16.mxu0 0
    %3290 = vmatpush1.bf16.msra.mxu0 %v2885
    %3291 = vmatprep.subr.bf16.mxu0 0
    %3292 = vmatpush1.bf16.msra.mxu0 %v2886
    %3293 = vmatprep.subr.bf16.mxu0 0
    %3294 = vmatpush1.bf16.msra.mxu0 %v2887
    %3295 = vmatprep.subr.bf16.mxu0 0
    %3296 = vmatpush1.bf16.msra.mxu0 %v2888
    %3297 = vmatprep.subr.bf16.mxu0 0
    %3298 = vmatpush1.bf16.msra.mxu0 %v2889
    %3299 = vmatprep.subr.bf16.mxu0 0
    %3300 = vmatpush1.bf16.msra.mxu0 %v2890
    %3301 = vmatprep.subr.bf16.mxu0 0
    %3302 = vmatpush1.bf16.msra.mxu0 %v2891
    %3303 = vmatprep.subr.bf16.mxu0 0
    %3304 = vmatpush1.bf16.msra.mxu0 %v2892
    %3305 = vmatprep.subr.bf16.mxu0 0
    %3306 = vmatpush1.bf16.msra.mxu0 %v2893
    %3307 = vmatprep.subr.bf16.mxu0 0
    %3308 = vmatpush1.bf16.msra.mxu0 %v2894
    %3309 = vmatprep.subr.bf16.mxu0 0
    %3310 = vmatpush1.bf16.msra.mxu0 %v2895
    %3311 = vmatprep.subr.bf16.mxu0 0
    %3312 = vmatpush1.bf16.msra.mxu0 %v2896
    %3313 = vmatprep.mubr.bf16.mxu0 %v2007
    %3314 = vmatmul.mubr.bf16.gmra.mrb[0].mxu0 %v2006
    %v3315 = vpop.f32.mrb[0].mxu0
    %v3316 = vadd.f32 %v3276, %v3315
    %v3317 = vpop.f32.mrb[0].mxu0
    %v3318 = vpop.f32.mrb[0].mxu0
    %v3319 = vpop.f32.mrb[0].mxu0
    %3320 = vdwg.mxu0
    %3321 = vmatprep.subr.bf16.mxu0 0
    %3322 = vmatpush1.bf16.msra.mxu0 %v2897
    %3323 = vmatprep.subr.bf16.mxu0 0
    %3324 = vmatpush1.bf16.msra.mxu0 %v2898
    %3325 = vmatprep.subr.bf16.mxu0 0
    %3326 = vmatpush1.bf16.msra.mxu0 %v2899
    %3327 = vmatprep.subr.bf16.mxu0 0
    %3328 = vmatpush1.bf16.msra.mxu0 %v2900
    %3329 = vmatprep.subr.bf16.mxu0 0
    %3330 = vmatpush1.bf16.msra.mxu0 %v2901
    %3331 = vmatprep.subr.bf16.mxu0 0
    %3332 = vmatpush1.bf16.msra.mxu0 %v2902
    %3333 = vmatprep.subr.bf16.mxu0 0
    %3334 = vmatpush1.bf16.msra.mxu0 %v2903
    %3335 = vmatprep.subr.bf16.mxu0 0
    %3336 = vmatpush1.bf16.msra.mxu0 %v2904
    %3337 = vmatprep.subr.bf16.mxu0 0
    %3338 = vmatpush1.bf16.msra.mxu0 %v2905
    %3339 = vmatprep.subr.bf16.mxu0 0
    %3340 = vmatpush1.bf16.msra.mxu0 %v2906
    %3341 = vmatprep.subr.bf16.mxu0 0
    %3342 = vmatpush1.bf16.msra.mxu0 %v2907
    %3343 = vmatprep.subr.bf16.mxu0 0
    %3344 = vmatpush1.bf16.msra.mxu0 %v2908
    %3345 = vmatprep.subr.bf16.mxu0 0
    %3346 = vmatpush1.bf16.msra.mxu0 %v2909
    %3347 = vmatprep.subr.bf16.mxu0 0
    %3348 = vmatpush1.bf16.msra.mxu0 %v2910
    %3349 = vmatprep.subr.bf16.mxu0 0
    %3350 = vmatpush1.bf16.msra.mxu0 %v2911
    %3351 = vmatprep.subr.bf16.mxu0 0
    %3352 = vmatpush1.bf16.msra.mxu0 %v2912
    %3353 = vmatprep.mubr.bf16.mxu0 %v2009
    %3354 = vmatmul.mubr.bf16.gmra.mrb[0].mxu0 %v2008
    %v3355 = vpop.f32.mrb[0].mxu0
    %v3356 = vadd.f32 %v3316, %v3355
    %v3357 = vpop.f32.mrb[0].mxu0
    %v3358 = vpop.f32.mrb[0].mxu0
    %v3359 = vpop.f32.mrb[0].mxu0
    %3360 = vdwg.mxu0
    %3361 = vst [vmem:[#allocation2] sm:$0xff] %v3356
    // Predicated region
    $region22: #{b1e_seq_pred_forward.1} parent=1 // pred_check
      _
    $region23: #{b1e_seq_pred_forward.1} parent=1 // pred_check_branch
      %3363 = sbr.rel (0) target = $region25
    $region24: #{b1e_seq_pred_forward.1} parent=1 // pred_region
      %s3365 = ssub.s32 128, 128
      %3366 = vsyncadd [#allocation3], %s3365
      %s3368 = sshll.u32 [#allocation2], 4
      %s3369 = int_to_ptr.vmem [resolvable:$true] %s3368
      %3371 = dma.vmem_to_hbm [thread:$0]  %s3369, 128, %s5, [#allocation3]
    $region25: #{b1e_seq_pred_forward.1} parent=1 // pred_fallthru
      _
    // Predicated region
    $region26: #{b1e_seq_pred_forward.1} parent=1 // pred_check
      _
    $region27: #{b1e_seq_pred_forward.1} parent=1 // pred_check_branch
      %3373 = sbr.rel (0) target = $region29
    $region28: #{b1e_seq_pred_forward.1} parent=1 // pred_region
      %3374 = dma.done [#allocation3], 128
    $region29: #{b1e_seq_pred_forward.1} parent=1 // pred_fallthru
      _
    %3375 = vsyncpa [#allocation3], 1

</llo_original>
